<compile_context>
chip_gen: v6e
topology: v6e:2x2x1
jax: 0.10.0
libtpu: 0.0.40
codegen_flags: <defaults>
</compile_context>

<pallas_src>
import math
import functools

import jax
import jax.numpy as jnp
from jax import lax
from jax.experimental import pallas as pl
from jax.experimental.pallas import tpu as pltpu


def _round_up(n, m):
    return ((n + m - 1) // m) * m


# ----------------------------------------------------------------------------
# Pallas kernel: TransformerEncoder forward (CLS row) for a block of Bt rows
# ----------------------------------------------------------------------------
def _encoder_kernel(
    xs_ref,      # (Bt, Spad, 3*Cin)  im2col conv input; CLS row and tail rows are 0
    kb_ref,      # (Bt, Spad, 1)      additive key-padding bias (0 or -1e30)
    wkv_ref,     # (3*Cin, 2D)        Conv1d weight folded into [Wk | Wv]
    addkv_ref,   # (Spad, 2D)         (CLS / pos-emb+conv-bias rows) @ [Wk|Wv] + [bk|bv]
    qmat_ref,    # (D, H)             block-diag CLS-query matrix (scale, bq folded)
    emat_ref,    # (H, D)             0/1 head -> channel expansion matrix
    cls_ref,     # (1, D)             CLS token (residual row; conv contributes 0 there)
    wo_ref, bo_ref,
    g1_ref, be1_ref,                  # LayerNorm 1
    w1_ref, b1_ref, w2_ref, b2_ref,   # feed-forward
    g2_ref, be2_ref,                  # LayerNorm 2
    out_ref,     # (Bt, Dpad)         CLS output rows, lane-dense (padded to 128)
    *, hidden_dim, eps, out_pad,
):
    Bt, Spad, K3 = xs_ref.shape
    D = hidden_dim
    H = qmat_ref.shape[1]
    cdt = wo_ref.dtype          # MXU operand dtype (bf16 once D is non-trivial)

    # --- fused Conv1d(k=3,'same') + K/V projection: ONE K=3*Cin matmul ---
    kv = jnp.dot(xs_ref[...].reshape(Bt * Spad, K3).astype(cdt), wkv_ref[...],
                 preferred_element_type=jnp.float32)
    kv = kv.reshape(Bt, Spad, 2 * D) + addkv_ref[...][None]       # (Bt, Spad, 2D)
    k = kv[:, :, :D]
    v = kv[:, :, D:]

    # --- attention scores for the (constant) CLS query, all heads at once ---
    # qmat[d, h] = q_cls_scaled[d] * (d // dh == h), so k @ qmat == per-head scores.
    s = jnp.dot(k.reshape(Bt * Spad, D).astype(cdt), qmat_ref[...],
                preferred_element_type=jnp.float32).reshape(Bt, Spad, H)
    s = s + kb_ref[...]                                           # key-padding bias
    m = jnp.max(s, axis=1, keepdims=True)                         # (Bt, 1, H)
    e = jnp.exp(s - m)                                            # (Bt, Spad, H)
    den = jnp.sum(e, axis=1, keepdims=True)                       # (Bt, 1, H)
    p = e * pl.reciprocal(den)                                    # exact reciprocal

    # expand per-head probs to per-channel with the 0/1 matrix, then weight V
    p_full = jnp.dot(p.reshape(Bt * Spad, H).astype(cdt), emat_ref[...],
                     preferred_element_type=jnp.float32).reshape(Bt, Spad, D)
    attn = jnp.sum(p_full * v, axis=1)                            # (Bt, D)
    attn = jnp.dot(attn.astype(cdt), wo_ref[...],
                   preferred_element_type=jnp.float32) + bo_ref[...]

    # --- residual + LayerNorm 1 (post-norm, PyTorch default), CLS row only ---
    y = cls_ref[...] + attn                                       # x[:,0] == cls token
    mu = jnp.mean(y, axis=-1, keepdims=True)
    var = jnp.mean((y - mu) ** 2, axis=-1, keepdims=True)
    y = (y - mu) * lax.rsqrt(var + eps) * g1_ref[...] + be1_ref[...]

    # --- feed-forward (Linear -> ReLU -> Linear), CLS row only ---
    # TODO(synk): dropout inside nn.TransformerEncoderLayer omitted (eval-mode identity).
    f = jnp.dot(y.astype(cdt), w1_ref[...], preferred_element_type=jnp.float32) + b1_ref[...]
    f = jnp.maximum(f, 0.0)
    f = jnp.dot(f.astype(cdt), w2_ref[...], preferred_element_type=jnp.float32) + b2_ref[...]

    # --- residual + LayerNorm 2 ---
    z = y + f
    mu2 = jnp.mean(z, axis=-1, keepdims=True)
    var2 = jnp.mean((z - mu2) ** 2, axis=-1, keepdims=True)
    z = (z - mu2) * lax.rsqrt(var2 + eps) * g2_ref[...] + be2_ref[...]

    if out_pad:   # pad feature dim so the store is a dense (multiple-of-128) vst
        z = jnp.concatenate([z, jnp.zeros((Bt, out_pad), z.dtype)], axis=-1)
    out_ref[...] = z


# ----------------------------------------------------------------------------
# Host-side glue: params, im2col, positional embedding, mask bias, folding
# ----------------------------------------------------------------------------
def build_params(key, input_dim, hidden_dim):
    D = hidden_dim
    ks = jax.random.split(key, 16)

    def n(k, shape, s=0.1):
        return (jax.random.normal(k, shape) * s).astype(jnp.float32)

    p = {}
    p["cls"] = jax.random.uniform(ks[0], (1, D), dtype=jnp.float32)   # torch.rand(1,1,D)
    p["conv_w"] = n(ks[1], (D, input_dim, 3))                         # Conv1d weight (out,in,k)
    p["conv_b"] = n(ks[2], (1, D))
    p["wq"] = n(ks[3], (D, D)); p["bq"] = n(ks[4], (1, D), 0.02)
    p["wk"] = n(ks[5], (D, D)); p["bk"] = n(ks[6], (1, D), 0.02)
    p["wv"] = n(ks[7], (D, D)); p["bv"] = n(ks[8], (1, D), 0.02)
    p["wo"] = n(ks[9], (D, D)); p["bo"] = n(ks[10], (1, D), 0.02)
    p["g1"] = jnp.ones((1, D), jnp.float32); p["be1"] = jnp.zeros((1, D), jnp.float32)
    p["w1"] = n(ks[11], (D, D)); p["b1"] = n(ks[12], (1, D), 0.02)    # dim_feedforward == D
    p["w2"] = n(ks[13], (D, D)); p["b2"] = n(ks[14], (1, D), 0.02)
    p["g2"] = jnp.ones((1, D), jnp.float32); p["be2"] = jnp.zeros((1, D), jnp.float32)
    return p


def _positional_embedding(L, D):
    pos = jnp.arange(L, dtype=jnp.float32)[:, None]
    div = jnp.exp(jnp.arange(0, D, 2, dtype=jnp.float32) * (-math.log(10000.0) / D))
    pe = jnp.zeros((L, D), jnp.float32)
    pe = pe.at[:, 0::2].set(jnp.sin(pos * div))
    pe = pe.at[:, 1::2].set(jnp.cos(pos * div))
    return pe


def _im2col_k3(x):
    B, L, Cin = x.shape
    x_pad = jnp.pad(x.astype(jnp.float32), ((0, 0), (1, 1), (0, 0)))
    xs = jnp.stack([x_pad[:, 0:L], x_pad[:, 1:L + 1], x_pad[:, 2:L + 2]], axis=2)
    return xs.reshape(B, L, 3 * Cin)


def forward_pallas(x, x_mask, params, hidden_dim, num_heads=4, batch_block=64):
    B, L, Cin = x.shape
    D = hidden_dim
    H = num_heads
    dh = D // H
    S = L + 1
    Spad = _round_up(S, 8)            # sublane-aligned sequence (padded keys masked)
    Dpad = _round_up(D, 128)          # lane-dense output feature dim

    # Batch tiling: sublane-aligned blocks; whole (padded) batch when it is small.
    # (v7x note: for large B, batch_block <= B/2 keeps >=2 grid steps so the
    # "parallel" axis shards across both TensorCores.)
    Bt = min(_round_up(batch_block, 8), _round_up(B, 8))
    Bpad = _round_up(B, Bt)

    # bf16 weights (f32 accumulate) once D is non-trivial; f32 at tiny sizes.
    cdt = jnp.bfloat16 if D >= 128 else jnp.float32

    # im2col conv input, with a zero row for the CLS slot and zero tail rows.
    xs = _im2col_k3(x)                                                  # (B, L, 3Cin)
    xs = jnp.pad(xs, ((0, Bpad - B), (1, Spad - S), (0, 0)))            # (Bpad, Spad, 3Cin)

    # Additive sequence tensor: row 0 = CLS, rows 1..L = pos-emb + conv bias, tail = 0.
    pe = _positional_embedding(L, D)
    add = jnp.zeros((Spad, D), jnp.float32)
    add = add.at[0].set(params["cls"][0])
    add = add.at[1:S].set(pe + params["conv_b"])

    # Key-padding bias (src_key_padding_mask=(1-x_mask).bool() with a zero CLS mask):
    # masked keys (incl. the CLS key and padded tail columns) get -1e30; padded batch
    # rows get all-zero bias (finite garbage, sliced off host-side).
    full_mask = jnp.concatenate([jnp.zeros((B, 1), dtype=x_mask.dtype), x_mask], axis=1)
    kbias = jnp.where(full_mask == 0, -1e30, 0.0).astype(jnp.float32)   # (B, S)
    kbias = jnp.pad(kbias, ((0, 0), (0, Spad - S)), constant_values=-1e30)
    kbias = jnp.pad(kbias, ((0, Bpad - B), (0, 0)), constant_values=0.0)
    kbias = kbias.reshape(Bpad, Spad, 1)

    # --- fold Conv1d into the K/V projection (3*Cin << D) ---
    w_conv_r = jnp.transpose(params["conv_w"], (2, 1, 0)).reshape(3 * Cin, D)
    wkv_d = jnp.concatenate([params["wk"], params["wv"]], axis=1)       # (D, 2D)
    bkv = jnp.concatenate([params["bk"], params["bv"]], axis=1)         # (1, 2D)
    wkv_fused = w_conv_r @ wkv_d                                        # (3Cin, 2D)
    add_kv = add @ wkv_d + bkv                                          # (Spad, 2D)

    # --- CLS query is a constant: fold scale + bq into a block-diag (D, H) matrix ---
    scale = 1.0 / math.sqrt(dh)
    q_cls = (params["cls"] @ params["wq"] + params["bq"]) * scale        # (1, D)
    onehot = ((jnp.arange(D)[:, None] // dh) ==
              jnp.arange(H)[None, :]).astype(jnp.float32)                # (D, H)
    qmat = q_cls.reshape(D, 1) * onehot                                  # (D, H)
    emat = onehot.T                                                      # (H, D)

    weights = [
        wkv_fused.astype(cdt), add_kv,
        qmat.astype(cdt), emat.astype(cdt),
        params["cls"],
        params["wo"].astype(cdt), params["bo"],
        params["g1"], params["be1"],
        params["w1"].astype(cdt), params["b1"],
        params["w2"].astype(cdt), params["b2"],
        params["g2"], params["be2"],
    ]

    # NOTE: constant-index weight operands could be single-buffered
    # (pipeline_mode=pl.Buffered(1)) to free VMEM on v7x; they are tiny here.
    def full_spec(a):
        n = a.ndim
        return pl.BlockSpec(a.shape, lambda b: (0,) * n)

    in_specs = [
        pl.BlockSpec((Bt, Spad, 3 * Cin), lambda b: (b, 0, 0)),
        pl.BlockSpec((Bt, Spad, 1), lambda b: (b, 0, 0)),
    ] + [full_spec(a) for a in weights]

    kernel = functools.partial(_encoder_kernel, hidden_dim=D, eps=1e-5,
                               out_pad=Dpad - D)

    out = pl.pallas_call(
        kernel,
        out_shape=jax.ShapeDtypeStruct((Bpad, Dpad), jnp.float32),
        grid=(Bpad // Bt,),
        in_specs=in_specs,
        out_specs=pl.BlockSpec((Bt, Dpad), lambda b: (b, 0)),
        compiler_params=pltpu.CompilerParams(
            dimension_semantics=("parallel",),        # independent batch blocks
            vmem_limit_bytes=32 * 1024 * 1024),       # explicit (v5e default is 16 MiB)
    )(xs, kbias, *weights)

    return out[:B, :D]


# ----------------------------------------------------------------------------
# Pure-JAX reference (full encoder, then take the CLS row) for correctness
# ----------------------------------------------------------------------------
def forward_reference(x, x_mask, params, hidden_dim, num_heads=4):
    B, L, Cin = x.shape
    D = hidden_dim
    S = L + 1
    dh = D // num_heads

    xs = _im2col_k3(x)
    w_conv_r = jnp.transpose(params["conv_w"], (2, 1, 0)).reshape(3 * Cin, D)
    h = jnp.einsum('blk,kd->bld', xs, w_conv_r) + params["conv_b"]
    h = h + _positional_embedding(L, D)[None]
    cls = jnp.broadcast_to(params["cls"][None], (B, 1, D))
    xx = jnp.concatenate([cls, h], axis=1)                              # (B, S, D)

    full_mask = jnp.concatenate([jnp.zeros((B, 1), dtype=x_mask.dtype), x_mask], axis=1)
    kbias = jnp.where(full_mask == 0, -1e30, 0.0).astype(jnp.float32)   # (B, S)

    def ln(z, g, bb):
        mu = jnp.mean(z, -1, keepdims=True)
        var = jnp.mean((z - mu) ** 2, -1, keepdims=True)
        return (z - mu) * lax.rsqrt(var + 1e-5) * g + bb

    q = xx @ params["wq"] + params["bq"]
    k = xx @ params["wk"] + params["bk"]
    v = xx @ params["wv"] + params["bv"]
    qh = q.reshape(B, S, num_heads, dh)
    kh = k.reshape(B, S, num_heads, dh)
    vh = v.reshape(B, S, num_heads, dh)
    sc = jnp.einsum('bshd,bthd->bhst', qh, kh) / math.sqrt(dh)
    sc = sc + kbias[:, None, None, :]
    p = jax.nn.softmax(sc, axis=-1)
    at = jnp.einsum('bhst,bthd->bshd', p, vh).reshape(B, S, D)
    at = at @ params["wo"] + params["bo"]
    y = ln(xx + at, params["g1"], params["be1"])
    f = jnp.maximum(y @ params["w1"] + params["b1"], 0.0) @ params["w2"] + params["b2"]
    z = ln(y + f, params["g2"], params["be2"])
    return z[:, 0]


if __name__ == "__main__":
    B, L, Cin, D, H = 2, 8, 1, 32, 4   # batch, input_len, input_dim, hidden_dim, nhead

    key = jax.random.PRNGKey(0)
    kx, kp = jax.random.split(key, 2)
    x = jax.random.normal(kx, (B, L, Cin), dtype=jnp.float32)
    # valid = 1, padding = 0 (last two positions of batch 1 are padding)
    x_mask = jnp.ones((B, L), dtype=jnp.int32).at[1, L - 2:].set(0)

    params = build_params(kp, Cin, D)

    out = forward_pallas(x, x_mask, params, D, H)
    out = jax.block_until_ready(out)
    assert out.shape == (B, D)

    ref = forward_reference(x, x_mask, params, D, H)
    err = float(jnp.max(jnp.abs(out - ref)))
    assert jnp.allclose(out, ref, atol=2e-2, rtol=2e-2), f"max abs err = {err}"

    print("KERNEL_OK")
</pallas_src>

<mosaic_0001>
module attributes {stable_mosaic.version = 11 : i64} {
  func.func @_encoder_kernel(%arg0: i32, %arg1: memref<8x16x3xf32, #tpu.memory_space<vmem>>, %arg2: memref<8x16x1xf32, #tpu.memory_space<vmem>>, %arg3: memref<3x64xf32, #tpu.memory_space<vmem>>, %arg4: memref<16x64xf32, #tpu.memory_space<vmem>>, %arg5: memref<32x4xf32, #tpu.memory_space<vmem>>, %arg6: memref<4x32xf32, #tpu.memory_space<vmem>>, %arg7: memref<1x32xf32, #tpu.memory_space<vmem>>, %arg8: memref<32x32xf32, #tpu.memory_space<vmem>>, %arg9: memref<1x32xf32, #tpu.memory_space<vmem>>, %arg10: memref<1x32xf32, #tpu.memory_space<vmem>>, %arg11: memref<1x32xf32, #tpu.memory_space<vmem>>, %arg12: memref<32x32xf32, #tpu.memory_space<vmem>>, %arg13: memref<1x32xf32, #tpu.memory_space<vmem>>, %arg14: memref<32x32xf32, #tpu.memory_space<vmem>>, %arg15: memref<1x32xf32, #tpu.memory_space<vmem>>, %arg16: memref<1x32xf32, #tpu.memory_space<vmem>>, %arg17: memref<1x32xf32, #tpu.memory_space<vmem>>, %arg18: memref<8x128xf32, #tpu.memory_space<vmem>>) attributes {dimension_semantics = [#tpu.dimension_semantics<parallel>], iteration_bounds = array<i64: 1>, scalar_prefetch = 0 : i64, scratch_operands = 0 : i64, tpu.core_type = #tpu.core_type<tc>, window_params = [{transform_indices = @transform_0, window_bounds = array<i64: 8, 16, 3>}, {transform_indices = @transform_1, window_bounds = array<i64: 8, 16, 1>}, {pipeline_mode = #tpu.pipeline_mode<synchronous>, transform_indices = @transform_2, window_bounds = array<i64: 3, 64>}, {pipeline_mode = #tpu.pipeline_mode<synchronous>, transform_indices = @transform_3, window_bounds = array<i64: 16, 64>}, {pipeline_mode = #tpu.pipeline_mode<synchronous>, transform_indices = @transform_4, window_bounds = array<i64: 32, 4>}, {pipeline_mode = #tpu.pipeline_mode<synchronous>, transform_indices = @transform_5, window_bounds = array<i64: 4, 32>}, {pipeline_mode = #tpu.pipeline_mode<synchronous>, transform_indices = @transform_6, window_bounds = array<i64: 1, 32>}, {pipeline_mode = #tpu.pipeline_mode<synchronous>, transform_indices = @transform_7, window_bounds = array<i64: 32, 32>}, {pipeline_mode = #tpu.pipeline_mode<synchronous>, transform_indices = @transform_8, window_bounds = array<i64: 1, 32>}, {pipeline_mode = #tpu.pipeline_mode<synchronous>, transform_indices = @transform_9, window_bounds = array<i64: 1, 32>}, {pipeline_mode = #tpu.pipeline_mode<synchronous>, transform_indices = @transform_10, window_bounds = array<i64: 1, 32>}, {pipeline_mode = #tpu.pipeline_mode<synchronous>, transform_indices = @transform_11, window_bounds = array<i64: 32, 32>}, {pipeline_mode = #tpu.pipeline_mode<synchronous>, transform_indices = @transform_12, window_bounds = array<i64: 1, 32>}, {pipeline_mode = #tpu.pipeline_mode<synchronous>, transform_indices = @transform_13, window_bounds = array<i64: 32, 32>}, {pipeline_mode = #tpu.pipeline_mode<synchronous>, transform_indices = @transform_14, window_bounds = array<i64: 1, 32>}, {pipeline_mode = #tpu.pipeline_mode<synchronous>, transform_indices = @transform_15, window_bounds = array<i64: 1, 32>}, {pipeline_mode = #tpu.pipeline_mode<synchronous>, transform_indices = @transform_16, window_bounds = array<i64: 1, 32>}, {transform_indices = @transform_17, window_bounds = array<i64: 8, 128>}]} {
    %c0 = arith.constant 0 : index
    %c0_0 = arith.constant 0 : index
    %c0_1 = arith.constant 0 : index
    %0 = vector.load %arg1[%c0, %c0_0, %c0_1] : memref<8x16x3xf32, #tpu.memory_space<vmem>>, vector<8x16x3xf32>
    %1 = vector.shape_cast %0 : vector<8x16x3xf32> to vector<128x3xf32>
    %c0_2 = arith.constant 0 : index
    %c0_3 = arith.constant 0 : index
    %2 = vector.load %arg3[%c0_2, %c0_3] : memref<3x64xf32, #tpu.memory_space<vmem>>, vector<3x64xf32>
    %cst = arith.constant dense<0.000000e+00> : vector<128x64xf32>
    %3 = tpu.matmul %1, %2, %cst {dimension_numbers = #tpu.dot_dimension_numbers<[1], [0], [0], [1], [0, 0, 1, 1], [], []>} : vector<128x3xf32>, vector<3x64xf32>, vector<128x64xf32> -> vector<128x64xf32>
    %4 = vector.shape_cast %3 : vector<128x64xf32> to vector<8x16x64xf32>
    %c0_4 = arith.constant 0 : index
    %c0_5 = arith.constant 0 : index
    %5 = vector.load %arg4[%c0_4, %c0_5] : memref<16x64xf32, #tpu.memory_space<vmem>>, vector<16x64xf32>
    %6 = vector.shape_cast %5 : vector<16x64xf32> to vector<1x16x64xf32>
    %7 = vector.broadcast %6 : vector<1x16x64xf32> to vector<8x16x64xf32>
    %8 = arith.addf %4, %7 : vector<8x16x64xf32>
    %9 = vector.extract_strided_slice %8 {offsets = [0, 0, 0], sizes = [8, 16, 32], strides = [1, 1, 1]} : vector<8x16x64xf32> to vector<8x16x32xf32>
    %10 = vector.extract_strided_slice %8 {offsets = [0, 0, 32], sizes = [8, 16, 32], strides = [1, 1, 1]} : vector<8x16x64xf32> to vector<8x16x32xf32>
    %11 = vector.shape_cast %9 : vector<8x16x32xf32> to vector<128x32xf32>
    %c0_6 = arith.constant 0 : index
    %c0_7 = arith.constant 0 : index
    %12 = vector.load %arg5[%c0_6, %c0_7] : memref<32x4xf32, #tpu.memory_space<vmem>>, vector<32x4xf32>
    %cst_8 = arith.constant dense<0.000000e+00> : vector<128x4xf32>
    %13 = tpu.matmul %11, %12, %cst_8 {dimension_numbers = #tpu.dot_dimension_numbers<[1], [0], [0], [1], [0, 0, 1, 1], [], []>} : vector<128x32xf32>, vector<32x4xf32>, vector<128x4xf32> -> vector<128x4xf32>
    %14 = vector.shape_cast %13 : vector<128x4xf32> to vector<8x16x4xf32>
    %c0_9 = arith.constant 0 : index
    %c0_10 = arith.constant 0 : index
    %c0_11 = arith.constant 0 : index
    %15 = vector.load %arg2[%c0_9, %c0_10, %c0_11] : memref<8x16x1xf32, #tpu.memory_space<vmem>>, vector<8x16x1xf32>
    %16 = vector.broadcast %15 : vector<8x16x1xf32> to vector<8x16x4xf32>
    %17 = arith.addf %14, %16 : vector<8x16x4xf32>
    %cst_12 = arith.constant dense<0xFF800000> : vector<8x4xf32>
    %18 = vector.multi_reduction <maximumf>, %17, %cst_12 [1] : vector<8x16x4xf32> to vector<8x4xf32>
    %19 = vector.shape_cast %18 : vector<8x4xf32> to vector<8x1x4xf32>
    %20 = vector.broadcast %19 : vector<8x1x4xf32> to vector<8x16x4xf32>
    %21 = arith.subf %17, %20 : vector<8x16x4xf32>
    %22 = math.exp %21 : vector<8x16x4xf32>
    %cst_13 = arith.constant dense<0.000000e+00> : vector<8x4xf32>
    %23 = vector.multi_reduction <add>, %22, %cst_13 [1] : vector<8x16x4xf32> to vector<8x4xf32>
    %24 = vector.shape_cast %23 : vector<8x4xf32> to vector<8x1x4xf32>
    %25 = tpu.reciprocal %24 : vector<8x1x4xf32> -> vector<8x1x4xf32>
    %26 = vector.broadcast %25 : vector<8x1x4xf32> to vector<8x16x4xf32>
    %27 = arith.mulf %22, %26 : vector<8x16x4xf32>
    %28 = vector.shape_cast %27 : vector<8x16x4xf32> to vector<128x4xf32>
    %c0_14 = arith.constant 0 : index
    %c0_15 = arith.constant 0 : index
    %29 = vector.load %arg6[%c0_14, %c0_15] : memref<4x32xf32, #tpu.memory_space<vmem>>, vector<4x32xf32>
    %cst_16 = arith.constant dense<0.000000e+00> : vector<128x32xf32>
    %30 = tpu.matmul %28, %29, %cst_16 {dimension_numbers = #tpu.dot_dimension_numbers<[1], [0], [0], [1], [0, 0, 1, 1], [], []>} : vector<128x4xf32>, vector<4x32xf32>, vector<128x32xf32> -> vector<128x32xf32>
    %31 = vector.shape_cast %30 : vector<128x32xf32> to vector<8x16x32xf32>
    %32 = arith.mulf %31, %10 : vector<8x16x32xf32>
    %cst_17 = arith.constant dense<0.000000e+00> : vector<8x32xf32>
    %33 = vector.multi_reduction <add>, %32, %cst_17 [1] : vector<8x16x32xf32> to vector<8x32xf32>
    %c0_18 = arith.constant 0 : index
    %c0_19 = arith.constant 0 : index
    %34 = vector.load %arg8[%c0_18, %c0_19] : memref<32x32xf32, #tpu.memory_space<vmem>>, vector<32x32xf32>
    %cst_20 = arith.constant dense<0.000000e+00> : vector<8x32xf32>
    %35 = tpu.matmul %33, %34, %cst_20 {dimension_numbers = #tpu.dot_dimension_numbers<[1], [0], [0], [1], [0, 0, 1, 1], [], []>} : vector<8x32xf32>, vector<32x32xf32>, vector<8x32xf32> -> vector<8x32xf32>
    %c0_21 = arith.constant 0 : index
    %c0_22 = arith.constant 0 : index
    %36 = vector.load %arg9[%c0_21, %c0_22] : memref<1x32xf32, #tpu.memory_space<vmem>>, vector<1x32xf32>
    %37 = vector.broadcast %36 : vector<1x32xf32> to vector<8x32xf32>
    %38 = arith.addf %35, %37 : vector<8x32xf32>
    %c0_23 = arith.constant 0 : index
    %c0_24 = arith.constant 0 : index
    %39 = vector.load %arg7[%c0_23, %c0_24] : memref<1x32xf32, #tpu.memory_space<vmem>>, vector<1x32xf32>
    %40 = vector.broadcast %39 : vector<1x32xf32> to vector<8x32xf32>
    %41 = arith.addf %40, %38 : vector<8x32xf32>
    %cst_25 = arith.constant dense<0.000000e+00> : vector<8xf32>
    %42 = vector.multi_reduction <add>, %41, %cst_25 [1] : vector<8x32xf32> to vector<8xf32>
    %43 = vector.shape_cast %42 : vector<8xf32> to vector<8x1xf32>
    %cst_26 = arith.constant 3.200000e+01 : f32
    %44 = vector.broadcast %cst_26 : f32 to vector<8x1xf32>
    %45 = arith.divf %43, %44 : vector<8x1xf32>
    %46 = vector.broadcast %45 : vector<8x1xf32> to vector<8x32xf32>
    %47 = arith.subf %41, %46 : vector<8x32xf32>
    %48 = arith.mulf %47, %47 : vector<8x32xf32>
    %cst_27 = arith.constant dense<0.000000e+00> : vector<8xf32>
    %49 = vector.multi_reduction <add>, %48, %cst_27 [1] : vector<8x32xf32> to vector<8xf32>
    %50 = vector.shape_cast %49 : vector<8xf32> to vector<8x1xf32>
    %cst_28 = arith.constant 3.200000e+01 : f32
    %51 = vector.broadcast %cst_28 : f32 to vector<8x1xf32>
    %52 = arith.divf %50, %51 : vector<8x1xf32>
    %53 = vector.broadcast %45 : vector<8x1xf32> to vector<8x32xf32>
    %54 = arith.subf %41, %53 : vector<8x32xf32>
    %cst_29 = arith.constant 9.99999974E-6 : f32
    %55 = vector.broadcast %cst_29 : f32 to vector<8x1xf32>
    %56 = arith.addf %52, %55 : vector<8x1xf32>
    %57 = math.rsqrt %56 : vector<8x1xf32>
    %58 = vector.broadcast %57 : vector<8x1xf32> to vector<8x32xf32>
    %59 = arith.mulf %54, %58 : vector<8x32xf32>
    %c0_30 = arith.constant 0 : index
    %c0_31 = arith.constant 0 : index
    %60 = vector.load %arg10[%c0_30, %c0_31] : memref<1x32xf32, #tpu.memory_space<vmem>>, vector<1x32xf32>
    %61 = vector.broadcast %60 : vector<1x32xf32> to vector<8x32xf32>
    %62 = arith.mulf %59, %61 : vector<8x32xf32>
    %c0_32 = arith.constant 0 : index
    %c0_33 = arith.constant 0 : index
    %63 = vector.load %arg11[%c0_32, %c0_33] : memref<1x32xf32, #tpu.memory_space<vmem>>, vector<1x32xf32>
    %64 = vector.broadcast %63 : vector<1x32xf32> to vector<8x32xf32>
    %65 = arith.addf %62, %64 : vector<8x32xf32>
    %c0_34 = arith.constant 0 : index
    %c0_35 = arith.constant 0 : index
    %66 = vector.load %arg12[%c0_34, %c0_35] : memref<32x32xf32, #tpu.memory_space<vmem>>, vector<32x32xf32>
    %cst_36 = arith.constant dense<0.000000e+00> : vector<8x32xf32>
    %67 = tpu.matmul %65, %66, %cst_36 {dimension_numbers = #tpu.dot_dimension_numbers<[1], [0], [0], [1], [0, 0, 1, 1], [], []>} : vector<8x32xf32>, vector<32x32xf32>, vector<8x32xf32> -> vector<8x32xf32>
    %c0_37 = arith.constant 0 : index
    %c0_38 = arith.constant 0 : index
    %68 = vector.load %arg13[%c0_37, %c0_38] : memref<1x32xf32, #tpu.memory_space<vmem>>, vector<1x32xf32>
    %69 = vector.broadcast %68 : vector<1x32xf32> to vector<8x32xf32>
    %70 = arith.addf %67, %69 : vector<8x32xf32>
    %cst_39 = arith.constant 0.000000e+00 : f32
    %71 = vector.broadcast %cst_39 : f32 to vector<8x32xf32>
    %72 = arith.maximumf %70, %71 : vector<8x32xf32>
    %c0_40 = arith.constant 0 : index
    %c0_41 = arith.constant 0 : index
    %73 = vector.load %arg14[%c0_40, %c0_41] : memref<32x32xf32, #tpu.memory_space<vmem>>, vector<32x32xf32>
    %cst_42 = arith.constant dense<0.000000e+00> : vector<8x32xf32>
    %74 = tpu.matmul %72, %73, %cst_42 {dimension_numbers = #tpu.dot_dimension_numbers<[1], [0], [0], [1], [0, 0, 1, 1], [], []>} : vector<8x32xf32>, vector<32x32xf32>, vector<8x32xf32> -> vector<8x32xf32>
    %c0_43 = arith.constant 0 : index
    %c0_44 = arith.constant 0 : index
    %75 = vector.load %arg15[%c0_43, %c0_44] : memref<1x32xf32, #tpu.memory_space<vmem>>, vector<1x32xf32>
    %76 = vector.broadcast %75 : vector<1x32xf32> to vector<8x32xf32>
    %77 = arith.addf %74, %76 : vector<8x32xf32>
    %78 = arith.addf %65, %77 : vector<8x32xf32>
    %cst_45 = arith.constant dense<0.000000e+00> : vector<8xf32>
    %79 = vector.multi_reduction <add>, %78, %cst_45 [1] : vector<8x32xf32> to vector<8xf32>
    %80 = vector.shape_cast %79 : vector<8xf32> to vector<8x1xf32>
    %cst_46 = arith.constant 3.200000e+01 : f32
    %81 = vector.broadcast %cst_46 : f32 to vector<8x1xf32>
    %82 = arith.divf %80, %81 : vector<8x1xf32>
    %83 = vector.broadcast %82 : vector<8x1xf32> to vector<8x32xf32>
    %84 = arith.subf %78, %83 : vector<8x32xf32>
    %85 = arith.mulf %84, %84 : vector<8x32xf32>
    %cst_47 = arith.constant dense<0.000000e+00> : vector<8xf32>
    %86 = vector.multi_reduction <add>, %85, %cst_47 [1] : vector<8x32xf32> to vector<8xf32>
    %87 = vector.shape_cast %86 : vector<8xf32> to vector<8x1xf32>
    %cst_48 = arith.constant 3.200000e+01 : f32
    %88 = vector.broadcast %cst_48 : f32 to vector<8x1xf32>
    %89 = arith.divf %87, %88 : vector<8x1xf32>
    %90 = vector.broadcast %82 : vector<8x1xf32> to vector<8x32xf32>
    %91 = arith.subf %78, %90 : vector<8x32xf32>
    %cst_49 = arith.constant 9.99999974E-6 : f32
    %92 = vector.broadcast %cst_49 : f32 to vector<8x1xf32>
    %93 = arith.addf %89, %92 : vector<8x1xf32>
    %94 = math.rsqrt %93 : vector<8x1xf32>
    %95 = vector.broadcast %94 : vector<8x1xf32> to vector<8x32xf32>
    %96 = arith.mulf %91, %95 : vector<8x32xf32>
    %c0_50 = arith.constant 0 : index
    %c0_51 = arith.constant 0 : index
    %97 = vector.load %arg16[%c0_50, %c0_51] : memref<1x32xf32, #tpu.memory_space<vmem>>, vector<1x32xf32>
    %98 = vector.broadcast %97 : vector<1x32xf32> to vector<8x32xf32>
    %99 = arith.mulf %96, %98 : vector<8x32xf32>
    %c0_52 = arith.constant 0 : index
    %c0_53 = arith.constant 0 : index
    %100 = vector.load %arg17[%c0_52, %c0_53] : memref<1x32xf32, #tpu.memory_space<vmem>>, vector<1x32xf32>
    %101 = vector.broadcast %100 : vector<1x32xf32> to vector<8x32xf32>
    %102 = arith.addf %99, %101 : vector<8x32xf32>
    %cst_54 = arith.constant 0.000000e+00 : f32
    %103 = vector.broadcast %cst_54 : f32 to vector<8x96xf32>
    %104 = tpu.concatenate %102, %103 in 1 : vector<8x32xf32>, vector<8x96xf32> -> vector<8x128xf32>
    %c0_55 = arith.constant 0 : index
    %c0_56 = arith.constant 0 : index
    %105 = vector.load %arg18[%c0_55, %c0_56] : memref<8x128xf32, #tpu.memory_space<vmem>>, vector<8x128xf32>
    tpu.vector_store %arg18[%c0_55, %c0_56], %104 {strides = array<i32>} : memref<8x128xf32, #tpu.memory_space<vmem>>, vector<8x128xf32>,
    return
  }
  func.func @transform_0(%arg0: i32) -> (i32, i32, i32) {
    %c0_i32 = arith.constant 0 : i32
    %c0_i32_0 = arith.constant 0 : i32
    %c0_i32_1 = arith.constant 0 : i32
    return %arg0, %c0_i32, %c0_i32_0 : i32, i32, i32
  }
  func.func @transform_1(%arg0: i32) -> (i32, i32, i32) {
    %c0_i32 = arith.constant 0 : i32
    %c0_i32_0 = arith.constant 0 : i32
    %c0_i32_1 = arith.constant 0 : i32
    return %arg0, %c0_i32, %c0_i32_0 : i32, i32, i32
  }
  func.func @transform_2(%arg0: i32) -> (i32, i32) {
    %c0_i32 = arith.constant 0 : i32
    %c0_i32_0 = arith.constant 0 : i32
    %c0_i32_1 = arith.constant 0 : i32
    return %c0_i32, %c0_i32_0 : i32, i32
  }
  func.func @transform_3(%arg0: i32) -> (i32, i32) {
    %c0_i32 = arith.constant 0 : i32
    %c0_i32_0 = arith.constant 0 : i32
    %c0_i32_1 = arith.constant 0 : i32
    return %c0_i32, %c0_i32_0 : i32, i32
  }
  func.func @transform_4(%arg0: i32) -> (i32, i32) {
    %c0_i32 = arith.constant 0 : i32
    %c0_i32_0 = arith.constant 0 : i32
    %c0_i32_1 = arith.constant 0 : i32
    return %c0_i32, %c0_i32_0 : i32, i32
  }
  func.func @transform_5(%arg0: i32) -> (i32, i32) {
    %c0_i32 = arith.constant 0 : i32
    %c0_i32_0 = arith.constant 0 : i32
    %c0_i32_1 = arith.constant 0 : i32
    return %c0_i32, %c0_i32_0 : i32, i32
  }
  func.func @transform_6(%arg0: i32) -> (i32, i32) {
    %c0_i32 = arith.constant 0 : i32
    %c0_i32_0 = arith.constant 0 : i32
    %c0_i32_1 = arith.constant 0 : i32
    return %c0_i32, %c0_i32_0 : i32, i32
  }
  func.func @transform_7(%arg0: i32) -> (i32, i32) {
    %c0_i32 = arith.constant 0 : i32
    %c0_i32_0 = arith.constant 0 : i32
    %c0_i32_1 = arith.constant 0 : i32
    return %c0_i32, %c0_i32_0 : i32, i32
  }
  func.func @transform_8(%arg0: i32) -> (i32, i32) {
    %c0_i32 = arith.constant 0 : i32
    %c0_i32_0 = arith.constant 0 : i32
    %c0_i32_1 = arith.constant 0 : i32
    return %c0_i32, %c0_i32_0 : i32, i32
  }
  func.func @transform_9(%arg0: i32) -> (i32, i32) {
    %c0_i32 = arith.constant 0 : i32
    %c0_i32_0 = arith.constant 0 : i32
    %c0_i32_1 = arith.constant 0 : i32
    return %c0_i32, %c0_i32_0 : i32, i32
  }
  func.func @transform_10(%arg0: i32) -> (i32, i32) {
    %c0_i32 = arith.constant 0 : i32
    %c0_i32_0 = arith.constant 0 : i32
    %c0_i32_1 = arith.constant 0 : i32
    return %c0_i32, %c0_i32_0 : i32, i32
  }
  func.func @transform_11(%arg0: i32) -> (i32, i32) {
    %c0_i32 = arith.constant 0 : i32
    %c0_i32_0 = arith.constant 0 : i32
    %c0_i32_1 = arith.constant 0 : i32
    return %c0_i32, %c0_i32_0 : i32, i32
  }
  func.func @transform_12(%arg0: i32) -> (i32, i32) {
    %c0_i32 = arith.constant 0 : i32
    %c0_i32_0 = arith.constant 0 : i32
    %c0_i32_1 = arith.constant 0 : i32
    return %c0_i32, %c0_i32_0 : i32, i32
  }
  func.func @transform_13(%arg0: i32) -> (i32, i32) {
    %c0_i32 = arith.constant 0 : i32
    %c0_i32_0 = arith.constant 0 : i32
    %c0_i32_1 = arith.constant 0 : i32
    return %c0_i32, %c0_i32_0 : i32, i32
  }
  func.func @transform_14(%arg0: i32) -> (i32, i32) {
    %c0_i32 = arith.constant 0 : i32
    %c0_i32_0 = arith.constant 0 : i32
    %c0_i32_1 = arith.constant 0 : i32
    return %c0_i32, %c0_i32_0 : i32, i32
  }
  func.func @transform_15(%arg0: i32) -> (i32, i32) {
    %c0_i32 = arith.constant 0 : i32
    %c0_i32_0 = arith.constant 0 : i32
    %c0_i32_1 = arith.constant 0 : i32
    return %c0_i32, %c0_i32_0 : i32, i32
  }
  func.func @transform_16(%arg0: i32) -> (i32, i32) {
    %c0_i32 = arith.constant 0 : i32
    %c0_i32_0 = arith.constant 0 : i32
    %c0_i32_1 = arith.constant 0 : i32
    return %c0_i32, %c0_i32_0 : i32, i32
  }
  func.func @transform_17(%arg0: i32) -> (i32, i32) {
    %c0_i32 = arith.constant 0 : i32
    %c0_i32_0 = arith.constant 0 : i32
    return %arg0, %c0_i32 : i32, i32
  }
}

</mosaic_0001>

<llo_original>
// kernel: tpu_custom_call.1
$region0: #{tpu_custom_call.1}
  #allocation0 [shape = 'u32[]', space=smem, size = 0x4, offset = 0x4, fixed_abs, tag = 'smem constant byte address 0x4 - core index']
  #allocation1 [shape = 'u32[144,128]{1,0:T(1,128)}', space=vmem, size = 0x12000, scoped, tag = 'internal scratch']
  %s0 = inlined_call_operand.vmem [shape: f32[8,16,3], index: 0, kind: input, shape index: {}]
  %s1 = inlined_call_operand.vmem [shape: f32[8,16,1], index: 1, kind: input, shape index: {}]
  %s2 = inlined_call_operand.vmem [shape: f32[3,64], index: 2, kind: input, shape index: {}]
  %s3 = inlined_call_operand.vmem [shape: f32[16,64], index: 3, kind: input, shape index: {}]
  %s4 = inlined_call_operand.vmem [shape: f32[32,4], index: 4, kind: input, shape index: {}]
  %s5 = inlined_call_operand.vmem [shape: f32[4,32], index: 5, kind: input, shape index: {}]
  %s6 = inlined_call_operand.vmem [shape: f32[1,32], index: 6, kind: input, shape index: {}]
  %s7 = inlined_call_operand.vmem [shape: f32[32,32], index: 7, kind: input, shape index: {}]
  %s8 = inlined_call_operand.vmem [shape: f32[1,32], index: 8, kind: input, shape index: {}]
  %s9 = inlined_call_operand.vmem [shape: f32[1,32], index: 9, kind: input, shape index: {}]
  %s10 = inlined_call_operand.vmem [shape: f32[1,32], index: 10, kind: input, shape index: {}]
  %s11 = inlined_call_operand.vmem [shape: f32[32,32], index: 11, kind: input, shape index: {}]
  %s12 = inlined_call_operand.vmem [shape: f32[1,32], index: 12, kind: input, shape index: {}]
  %s13 = inlined_call_operand.vmem [shape: f32[32,32], index: 13, kind: input, shape index: {}]
  %s14 = inlined_call_operand.vmem [shape: f32[1,32], index: 14, kind: input, shape index: {}]
  %s15 = inlined_call_operand.vmem [shape: f32[1,32], index: 15, kind: input, shape index: {}]
  %s16 = inlined_call_operand.vmem [shape: f32[1,32], index: 16, kind: input, shape index: {}]
  %s17 = inlined_call_operand.hbm [shape: f32[8,128], index: 17, kind: output, shape index: {}]
  %s18 = sld [smem:[#allocation0]]
  $region78: #{tpu_custom_call.1} parent=0
    _
  %s20 = ssub.s32 1, %s18
  %s21 = scalar_select 0, %s20, %s18
  $region1: #{tpu_custom_call.1} parent=0
    #allocation2 [shape = 'u8[4096]{0}', space=vmem, size = 0x1000, scoped, tag = 'output window, operand 0, single buffered']
    #allocation3 [shape = 's32[1]{0}', space=sflag, size = 0x4, scoped, tag = 'scoped memory for tpu_custom_call.1']
    %22 = vsyncpa [#allocation3], 0
    // Predicated region
    $region2: #{tpu_custom_call.1} parent=1 // pred_check
      _
    $region3: #{tpu_custom_call.1} parent=1 // pred_check_branch
      %24 = sbr.rel (0) target = $region5
    $region4: #{tpu_custom_call.1} parent=1 // pred_region
      _
    $region5: #{tpu_custom_call.1} parent=1 // pred_fallthru
      _
    // Predicated region
    $region6: #{tpu_custom_call.1} parent=1 // pred_check
      _
    $region7: #{tpu_custom_call.1} parent=1 // pred_check_branch
      %26 = sbr.rel (0) target = $region9
    $region8: #{tpu_custom_call.1} parent=1 // pred_region
      _
    $region9: #{tpu_custom_call.1} parent=1 // pred_fallthru
      _
    // Predicated region
    $region10: #{tpu_custom_call.1} parent=1 // pred_check
      _
    $region11: #{tpu_custom_call.1} parent=1 // pred_check_branch
      %28 = sbr.rel (0) target = $region13
    $region12: #{tpu_custom_call.1} parent=1 // pred_region
      _
    $region13: #{tpu_custom_call.1} parent=1 // pred_fallthru
      _
    // Predicated region
    $region14: #{tpu_custom_call.1} parent=1 // pred_check
      _
    $region15: #{tpu_custom_call.1} parent=1 // pred_check_branch
      %30 = sbr.rel (0) target = $region17
    $region16: #{tpu_custom_call.1} parent=1 // pred_region
      _
    $region17: #{tpu_custom_call.1} parent=1 // pred_fallthru
      _
    // Predicated region
    $region18: #{tpu_custom_call.1} parent=1 // pred_check
      _
    $region19: #{tpu_custom_call.1} parent=1 // pred_check_branch
      %32 = sbr.rel (0) target = $region21
    $region20: #{tpu_custom_call.1} parent=1 // pred_region
      _
    $region21: #{tpu_custom_call.1} parent=1 // pred_fallthru
      _
    // Predicated region
    $region22: #{tpu_custom_call.1} parent=1 // pred_check
      _
    $region23: #{tpu_custom_call.1} parent=1 // pred_check_branch
      %34 = sbr.rel (0) target = $region25
    $region24: #{tpu_custom_call.1} parent=1 // pred_region
      _
    $region25: #{tpu_custom_call.1} parent=1 // pred_fallthru
      _
    // Predicated region
    $region26: #{tpu_custom_call.1} parent=1 // pred_check
      _
    $region27: #{tpu_custom_call.1} parent=1 // pred_check_branch
      %36 = sbr.rel (0) target = $region29
    $region28: #{tpu_custom_call.1} parent=1 // pred_region
      _
    $region29: #{tpu_custom_call.1} parent=1 // pred_fallthru
      _
    // Predicated region
    $region30: #{tpu_custom_call.1} parent=1 // pred_check
      _
    $region31: #{tpu_custom_call.1} parent=1 // pred_check_branch
      %38 = sbr.rel (0) target = $region33
    $region32: #{tpu_custom_call.1} parent=1 // pred_region
      _
    $region33: #{tpu_custom_call.1} parent=1 // pred_fallthru
      _
    // Predicated region
    $region34: #{tpu_custom_call.1} parent=1 // pred_check
      _
    $region35: #{tpu_custom_call.1} parent=1 // pred_check_branch
      %40 = sbr.rel (0) target = $region37
    $region36: #{tpu_custom_call.1} parent=1 // pred_region
      _
    $region37: #{tpu_custom_call.1} parent=1 // pred_fallthru
      _
    // Predicated region
    $region38: #{tpu_custom_call.1} parent=1 // pred_check
      _
    $region39: #{tpu_custom_call.1} parent=1 // pred_check_branch
      %42 = sbr.rel (0) target = $region41
    $region40: #{tpu_custom_call.1} parent=1 // pred_region
      _
    $region41: #{tpu_custom_call.1} parent=1 // pred_fallthru
      _
    // Predicated region
    $region42: #{tpu_custom_call.1} parent=1 // pred_check
      _
    $region43: #{tpu_custom_call.1} parent=1 // pred_check_branch
      %44 = sbr.rel (0) target = $region45
    $region44: #{tpu_custom_call.1} parent=1 // pred_region
      _
    $region45: #{tpu_custom_call.1} parent=1 // pred_fallthru
      _
    // Predicated region
    $region46: #{tpu_custom_call.1} parent=1 // pred_check
      _
    $region47: #{tpu_custom_call.1} parent=1 // pred_check_branch
      %46 = sbr.rel (0) target = $region49
    $region48: #{tpu_custom_call.1} parent=1 // pred_region
      _
    $region49: #{tpu_custom_call.1} parent=1 // pred_fallthru
      _
    // Predicated region
    $region50: #{tpu_custom_call.1} parent=1 // pred_check
      _
    $region51: #{tpu_custom_call.1} parent=1 // pred_check_branch
      %48 = sbr.rel (0) target = $region53
    $region52: #{tpu_custom_call.1} parent=1 // pred_region
      _
    $region53: #{tpu_custom_call.1} parent=1 // pred_fallthru
      _
    // Predicated region
    $region54: #{tpu_custom_call.1} parent=1 // pred_check
      _
    $region55: #{tpu_custom_call.1} parent=1 // pred_check_branch
      %50 = sbr.rel (0) target = $region57
    $region56: #{tpu_custom_call.1} parent=1 // pred_region
      _
    $region57: #{tpu_custom_call.1} parent=1 // pred_fallthru
      _
    // Predicated region
    $region58: #{tpu_custom_call.1} parent=1 // pred_check
      _
    $region59: #{tpu_custom_call.1} parent=1 // pred_check_branch
      %52 = sbr.rel (0) target = $region61
    $region60: #{tpu_custom_call.1} parent=1 // pred_region
      _
    $region61: #{tpu_custom_call.1} parent=1 // pred_fallthru
      _
    // Predicated region
    $region62: #{tpu_custom_call.1} parent=1 // pred_check
      _
    $region63: #{tpu_custom_call.1} parent=1 // pred_check_branch
      %54 = sbr.rel (0) target = $region65
    $region64: #{tpu_custom_call.1} parent=1 // pred_region
      _
    $region65: #{tpu_custom_call.1} parent=1 // pred_fallthru
      _
    // Predicated region
    $region66: #{tpu_custom_call.1} parent=1 // pred_check
      _
    $region67: #{tpu_custom_call.1} parent=1 // pred_check_branch
      %56 = sbr.rel (0) target = $region69
    $region68: #{tpu_custom_call.1} parent=1 // pred_region
      _
    $region69: #{tpu_custom_call.1} parent=1 // pred_fallthru
      _
    %v57 = vld [vmem:[%s0] sm:$0xff]
    %v58 = vld [vmem:[%s0 + $0x8] sm:$0xff]
    %v59 = vld [vmem:[%s0 + $0x10] sm:$0xff]
    %v60 = vld [vmem:[%s0 + $0x18] sm:$0xff]
    %v61 = vld [vmem:[%s0 + $0x20] sm:$0xff]
    %v62 = vld [vmem:[%s0 + $0x28] sm:$0xff]
    %v63 = vld [vmem:[%s0 + $0x30] sm:$0xff]
    %v64 = vld [vmem:[%s0 + $0x38] sm:$0xff]
    %v65 = vld [vmem:[%s0 + $0x40] sm:$0xff]
    %v66 = vld [vmem:[%s0 + $0x48] sm:$0xff]
    %v67 = vld [vmem:[%s0 + $0x50] sm:$0xff]
    %v68 = vld [vmem:[%s0 + $0x58] sm:$0xff]
    %v69 = vld [vmem:[%s0 + $0x60] sm:$0xff]
    %v70 = vld [vmem:[%s0 + $0x68] sm:$0xff]
    %v71 = vld [vmem:[%s0 + $0x70] sm:$0xff]
    %v72 = vld [vmem:[%s0 + $0x78] sm:$0xff]
    %v73 = vld [vmem:[%s2] sm:$0x7]
    %vm74 = vcmask 23552
    %v76 = vsel %vm74, %v57, 0
    %v79 = vsel %vm74, %v58, 0
    %v82 = vsel %vm74, %v59, 0
    %v85 = vsel %vm74, %v60, 0
    %v88 = vsel %vm74, %v61, 0
    %v91 = vsel %vm74, %v62, 0
    %v94 = vsel %vm74, %v63, 0
    %v97 = vsel %vm74, %v64, 0
    %v100 = vsel %vm74, %v65, 0
    %v103 = vsel %vm74, %v66, 0
    %v106 = vsel %vm74, %v67, 0
    %v109 = vsel %vm74, %v68, 0
    %v112 = vsel %vm74, %v69, 0
    %v115 = vsel %vm74, %v70, 0
    %v118 = vsel %vm74, %v71, 0
    %v121 = vsel %vm74, %v72, 0
    %vm123 = vcmask 1042432
    %v125 = vsel %vm123, %v73, 0
    %127 = vmatprep.subr.mxu0 0.0
    %128 = vmatpush1.msra.mxu0 0.0
    %129 = vmatprep.subr.mxu0 0.0
    %130 = vmatpush1.msra.mxu0 0.0
    %131 = vmatprep.subr.mxu0 0.0
    %132 = vmatpush1.msra.mxu0 0.0
    %133 = vmatprep.subr.mxu0 0.0
    %134 = vmatpush1.msra.mxu0 0.0
    %135 = vmatprep.subr.mxu0 0.0
    %136 = vmatpush1.msra.mxu0 0.0
    %137 = vmatprep.subr.mxu0 0.0
    %138 = vmatpush1.msra.mxu0 0.0
    %139 = vmatprep.subr.mxu0 0.0
    %140 = vmatpush1.msra.mxu0 0.0
    %141 = vmatprep.subr.mxu0 0.0
    %142 = vmatpush1.msra.mxu0 0.0
    %143 = vmatprep.subr.mxu0 0.0
    %144 = vmatpush1.msra.mxu0 0.0
    %145 = vmatprep.subr.mxu0 0.0
    %146 = vmatpush1.msra.mxu0 0.0
    %147 = vmatprep.subr.mxu0 0.0
    %148 = vmatpush1.msra.mxu0 0.0
    %149 = vmatprep.subr.mxu0 0.0
    %150 = vmatpush1.msra.mxu0 0.0
    %151 = vmatprep.subr.mxu0 0.0
    %152 = vmatpush1.msra.mxu0 0.0
    %153 = vmatprep.subr.mxu0 0.0
    %154 = vmatpush1.msra.mxu0 0.0
    %155 = vmatprep.subr.mxu0 0.0
    %156 = vmatpush1.msra.mxu0 0.0
    %157 = vmatprep.subr.mxu0 0.0
    %158 = vmatpush1.msra.mxu0 %v125
    %159 = vmatprep.subr.mxu0 0.0
    %160 = vmatpush2.msra.mxu0 0.0
    %161 = vmatprep.subr.mxu0 0.0
    %162 = vmatpush2.msra.mxu0 0.0
    %163 = vmatprep.subr.mxu0 0.0
    %164 = vmatpush2.msra.mxu0 0.0
    %165 = vmatprep.subr.mxu0 0.0
    %166 = vmatpush2.msra.mxu0 0.0
    %167 = vmatprep.subr.mxu0 0.0
    %168 = vmatpush2.msra.mxu0 0.0
    %169 = vmatprep.subr.mxu0 0.0
    %170 = vmatpush2.msra.mxu0 0.0
    %171 = vmatprep.subr.mxu0 0.0
    %172 = vmatpush2.msra.mxu0 0.0
    %173 = vmatprep.subr.mxu0 0.0
    %174 = vmatpush2.msra.mxu0 0.0
    %175 = vmatprep.subr.mxu0 0.0
    %176 = vmatpush2.msra.mxu0 0.0
    %177 = vmatprep.subr.mxu0 0.0
    %178 = vmatpush2.msra.mxu0 0.0
    %179 = vmatprep.subr.mxu0 0.0
    %180 = vmatpush2.msra.mxu0 0.0
    %181 = vmatprep.subr.mxu0 0.0
    %182 = vmatpush2.msra.mxu0 0.0
    %183 = vmatprep.subr.mxu0 0.0
    %184 = vmatpush2.msra.mxu0 0.0
    %185 = vmatprep.subr.mxu0 0.0
    %186 = vmatpush2.msra.mxu0 0.0
    %187 = vmatprep.subr.mxu0 0.0
    %188 = vmatpush2.msra.mxu0 0.0
    %189 = vmatprep.subr.mxu0 0.0
    %190 = vmatpush2.msra.mxu0 0.0
    %191 = vmatprep.mubr.f32.mxu0 0.0
    %192 = vmatmul.mubr.f32.gmra.mxu0 %v76
    %v193 = vpop.f32.mrf.mxu0
    %v194 = vadd.f32 0.0, %v193
    %v195 = vpop.f32.mrf.mxu0
    %196 = vmatprep.mubr.f32.mxu0 0.0
    %197 = vmatmul.mubr.f32.gmra.mxu0 %v79
    %v198 = vpop.f32.mrf.mxu0
    %v199 = vadd.f32 0.0, %v198
    %v200 = vpop.f32.mrf.mxu0
    %201 = vmatprep.mubr.f32.mxu0 0.0
    %202 = vmatmul.mubr.f32.gmra.mxu0 %v82
    %v203 = vpop.f32.mrf.mxu0
    %v204 = vadd.f32 0.0, %v203
    %v205 = vpop.f32.mrf.mxu0
    %206 = vmatprep.mubr.f32.mxu0 0.0
    %207 = vmatmul.mubr.f32.gmra.mxu0 %v85
    %v208 = vpop.f32.mrf.mxu0
    %v209 = vadd.f32 0.0, %v208
    %v210 = vpop.f32.mrf.mxu0
    %211 = vmatprep.mubr.f32.mxu0 0.0
    %212 = vmatmul.mubr.f32.gmra.mxu0 %v88
    %v213 = vpop.f32.mrf.mxu0
    %v214 = vadd.f32 0.0, %v213
    %v215 = vpop.f32.mrf.mxu0
    %216 = vmatprep.mubr.f32.mxu0 0.0
    %217 = vmatmul.mubr.f32.gmra.mxu0 %v91
    %v218 = vpop.f32.mrf.mxu0
    %v219 = vadd.f32 0.0, %v218
    %v220 = vpop.f32.mrf.mxu0
    %221 = vmatprep.mubr.f32.mxu0 0.0
    %222 = vmatmul.mubr.f32.gmra.mxu0 %v94
    %v223 = vpop.f32.mrf.mxu0
    %v224 = vadd.f32 0.0, %v223
    %v225 = vpop.f32.mrf.mxu0
    %226 = vmatprep.mubr.f32.mxu0 0.0
    %227 = vmatmul.mubr.f32.gmra.mxu0 %v97
    %v228 = vpop.f32.mrf.mxu0
    %v229 = vadd.f32 0.0, %v228
    %v230 = vpop.f32.mrf.mxu0
    %231 = vmatprep.mubr.f32.mxu0 0.0
    %232 = vmatmul.mubr.f32.gmra.mxu0 %v100
    %v233 = vpop.f32.mrf.mxu0
    %v234 = vadd.f32 0.0, %v233
    %v235 = vpop.f32.mrf.mxu0
    %236 = vmatprep.mubr.f32.mxu0 0.0
    %237 = vmatmul.mubr.f32.gmra.mxu0 %v103
    %v238 = vpop.f32.mrf.mxu0
    %v239 = vadd.f32 0.0, %v238
    %v240 = vpop.f32.mrf.mxu0
    %241 = vmatprep.mubr.f32.mxu0 0.0
    %242 = vmatmul.mubr.f32.gmra.mxu0 %v106
    %v243 = vpop.f32.mrf.mxu0
    %v244 = vadd.f32 0.0, %v243
    %v245 = vpop.f32.mrf.mxu0
    %246 = vmatprep.mubr.f32.mxu0 0.0
    %247 = vmatmul.mubr.f32.gmra.mxu0 %v109
    %v248 = vpop.f32.mrf.mxu0
    %v249 = vadd.f32 0.0, %v248
    %v250 = vpop.f32.mrf.mxu0
    %251 = vmatprep.mubr.f32.mxu0 0.0
    %252 = vmatmul.mubr.f32.gmra.mxu0 %v112
    %v253 = vpop.f32.mrf.mxu0
    %v254 = vadd.f32 0.0, %v253
    %v255 = vpop.f32.mrf.mxu0
    %256 = vmatprep.mubr.f32.mxu0 0.0
    %257 = vmatmul.mubr.f32.gmra.mxu0 %v115
    %v258 = vpop.f32.mrf.mxu0
    %v259 = vadd.f32 0.0, %v258
    %v260 = vpop.f32.mrf.mxu0
    %261 = vmatprep.mubr.f32.mxu0 0.0
    %262 = vmatmul.mubr.f32.gmra.mxu0 %v118
    %v263 = vpop.f32.mrf.mxu0
    %v264 = vadd.f32 0.0, %v263
    %v265 = vpop.f32.mrf.mxu0
    %266 = vmatprep.mubr.f32.mxu0 0.0
    %267 = vmatmul.mubr.f32.gmra.mxu0 %v121
    %v268 = vpop.f32.mrf.mxu0
    %v269 = vadd.f32 0.0, %v268
    %v270 = vpop.f32.mrf.mxu0
    %271 = vdwg.mxu0
    %v272 = vld [vmem:[%s3] sm:$0xff]
    %v273 = vld [vmem:[%s3 + $0x8] sm:$0xff]
    %v274 = vadd.f32 %v194, %v272
    %v275 = vadd.f32 %v199, %v273
    %v276 = vadd.f32 %v204, %v272
    %v277 = vadd.f32 %v209, %v273
    %v278 = vadd.f32 %v214, %v272
    %v279 = vadd.f32 %v219, %v273
    %v280 = vadd.f32 %v224, %v272
    %v281 = vadd.f32 %v229, %v273
    %v282 = vadd.f32 %v234, %v272
    %v283 = vadd.f32 %v239, %v273
    %v284 = vadd.f32 %v244, %v272
    %v285 = vadd.f32 %v249, %v273
    %v286 = vadd.f32 %v254, %v272
    %v287 = vadd.f32 %v259, %v273
    %v288 = vadd.f32 %v264, %v272
    %v289 = vadd.f32 %v269, %v273
    %v290 = vld [vmem:[%s4] sm:$0xff]
    %v291 = vld [vmem:[%s4 + $0x8] sm:$0xff]
    %v292 = vld [vmem:[%s4 + $0x10] sm:$0xff]
    %v293 = vld [vmem:[%s4 + $0x18] sm:$0xff]
    %vm294 = vcmask 261120
    %v296 = vsel %vm294, %v274, 0
    %v299 = vsel %vm294, %v275, 0
    %v302 = vsel %vm294, %v276, 0
    %v305 = vsel %vm294, %v277, 0
    %v308 = vsel %vm294, %v278, 0
    %v311 = vsel %vm294, %v279, 0
    %v314 = vsel %vm294, %v280, 0
    %v317 = vsel %vm294, %v281, 0
    %v320 = vsel %vm294, %v282, 0
    %v323 = vsel %vm294, %v283, 0
    %v326 = vsel %vm294, %v284, 0
    %v329 = vsel %vm294, %v285, 0
    %v332 = vsel %vm294, %v286, 0
    %v335 = vsel %vm294, %v287, 0
    %v338 = vsel %vm294, %v288, 0
    %v341 = vsel %vm294, %v289, 0
    %343 = vmatprep.subr.mxu0 0.0
    %344 = vmatpush1.msra.mxu0 0.0
    %345 = vmatprep.subr.mxu0 0.0
    %346 = vmatpush1.msra.mxu0 0.0
    %347 = vmatprep.subr.mxu0 0.0
    %348 = vmatpush1.msra.mxu0 0.0
    %349 = vmatprep.subr.mxu0 0.0
    %350 = vmatpush1.msra.mxu0 0.0
    %351 = vmatprep.subr.mxu0 0.0
    %352 = vmatpush1.msra.mxu0 0.0
    %353 = vmatprep.subr.mxu0 0.0
    %354 = vmatpush1.msra.mxu0 0.0
    %355 = vmatprep.subr.mxu0 0.0
    %356 = vmatpush1.msra.mxu0 0.0
    %357 = vmatprep.subr.mxu0 0.0
    %358 = vmatpush1.msra.mxu0 0.0
    %359 = vmatprep.subr.mxu0 0.0
    %360 = vmatpush1.msra.mxu0 0.0
    %361 = vmatprep.subr.mxu0 0.0
    %362 = vmatpush1.msra.mxu0 0.0
    %363 = vmatprep.subr.mxu0 0.0
    %364 = vmatpush1.msra.mxu0 0.0
    %365 = vmatprep.subr.mxu0 0.0
    %366 = vmatpush1.msra.mxu0 0.0
    %367 = vmatprep.subr.mxu0 0.0
    %368 = vmatpush1.msra.mxu0 %v293
    %369 = vmatprep.subr.mxu0 0.0
    %370 = vmatpush1.msra.mxu0 %v292
    %371 = vmatprep.subr.mxu0 0.0
    %372 = vmatpush1.msra.mxu0 %v291
    %373 = vmatprep.subr.mxu0 0.0
    %374 = vmatpush1.msra.mxu0 %v290
    %375 = vmatprep.subr.mxu0 0.0
    %376 = vmatpush2.msra.mxu0 0.0
    %377 = vmatprep.subr.mxu0 0.0
    %378 = vmatpush2.msra.mxu0 0.0
    %379 = vmatprep.subr.mxu0 0.0
    %380 = vmatpush2.msra.mxu0 0.0
    %381 = vmatprep.subr.mxu0 0.0
    %382 = vmatpush2.msra.mxu0 0.0
    %383 = vmatprep.subr.mxu0 0.0
    %384 = vmatpush2.msra.mxu0 0.0
    %385 = vmatprep.subr.mxu0 0.0
    %386 = vmatpush2.msra.mxu0 0.0
    %387 = vmatprep.subr.mxu0 0.0
    %388 = vmatpush2.msra.mxu0 0.0
    %389 = vmatprep.subr.mxu0 0.0
    %390 = vmatpush2.msra.mxu0 0.0
    %391 = vmatprep.subr.mxu0 0.0
    %392 = vmatpush2.msra.mxu0 0.0
    %393 = vmatprep.subr.mxu0 0.0
    %394 = vmatpush2.msra.mxu0 0.0
    %395 = vmatprep.subr.mxu0 0.0
    %396 = vmatpush2.msra.mxu0 0.0
    %397 = vmatprep.subr.mxu0 0.0
    %398 = vmatpush2.msra.mxu0 0.0
    %399 = vmatprep.subr.mxu0 0.0
    %400 = vmatpush2.msra.mxu0 0.0
    %401 = vmatprep.subr.mxu0 0.0
    %402 = vmatpush2.msra.mxu0 0.0
    %403 = vmatprep.subr.mxu0 0.0
    %404 = vmatpush2.msra.mxu0 0.0
    %405 = vmatprep.subr.mxu0 0.0
    %406 = vmatpush2.msra.mxu0 0.0
    %407 = vmatprep.mubr.f32.mxu0 0.0
    %408 = vmatmul.mubr.f32.gmra.mxu0 %v296
    %v409 = vpop.f32.mrf.mxu0
    %v410 = vadd.f32 0.0, %v409
    %v411 = vpop.f32.mrf.mxu0
    %412 = vmatprep.mubr.f32.mxu0 0.0
    %413 = vmatmul.mubr.f32.gmra.mxu0 %v299
    %v414 = vpop.f32.mrf.mxu0
    %v415 = vadd.f32 0.0, %v414
    %v416 = vpop.f32.mrf.mxu0
    %417 = vmatprep.mubr.f32.mxu0 0.0
    %418 = vmatmul.mubr.f32.gmra.mxu0 %v302
    %v419 = vpop.f32.mrf.mxu0
    %v420 = vadd.f32 0.0, %v419
    %v421 = vpop.f32.mrf.mxu0
    %422 = vmatprep.mubr.f32.mxu0 0.0
    %423 = vmatmul.mubr.f32.gmra.mxu0 %v305
    %v424 = vpop.f32.mrf.mxu0
    %v425 = vadd.f32 0.0, %v424
    %v426 = vpop.f32.mrf.mxu0
    %427 = vmatprep.mubr.f32.mxu0 0.0
    %428 = vmatmul.mubr.f32.gmra.mxu0 %v308
    %v429 = vpop.f32.mrf.mxu0
    %v430 = vadd.f32 0.0, %v429
    %v431 = vpop.f32.mrf.mxu0
    %432 = vmatprep.mubr.f32.mxu0 0.0
    %433 = vmatmul.mubr.f32.gmra.mxu0 %v311
    %v434 = vpop.f32.mrf.mxu0
    %v435 = vadd.f32 0.0, %v434
    %v436 = vpop.f32.mrf.mxu0
    %437 = vmatprep.mubr.f32.mxu0 0.0
    %438 = vmatmul.mubr.f32.gmra.mxu0 %v314
    %v439 = vpop.f32.mrf.mxu0
    %v440 = vadd.f32 0.0, %v439
    %v441 = vpop.f32.mrf.mxu0
    %442 = vmatprep.mubr.f32.mxu0 0.0
    %443 = vmatmul.mubr.f32.gmra.mxu0 %v317
    %v444 = vpop.f32.mrf.mxu0
    %v445 = vadd.f32 0.0, %v444
    %v446 = vpop.f32.mrf.mxu0
    %447 = vmatprep.mubr.f32.mxu0 0.0
    %448 = vmatmul.mubr.f32.gmra.mxu0 %v320
    %v449 = vpop.f32.mrf.mxu0
    %v450 = vadd.f32 0.0, %v449
    %v451 = vpop.f32.mrf.mxu0
    %452 = vmatprep.mubr.f32.mxu0 0.0
    %453 = vmatmul.mubr.f32.gmra.mxu0 %v323
    %v454 = vpop.f32.mrf.mxu0
    %v455 = vadd.f32 0.0, %v454
    %v456 = vpop.f32.mrf.mxu0
    %457 = vmatprep.mubr.f32.mxu0 0.0
    %458 = vmatmul.mubr.f32.gmra.mxu0 %v326
    %v459 = vpop.f32.mrf.mxu0
    %v460 = vadd.f32 0.0, %v459
    %v461 = vpop.f32.mrf.mxu0
    %462 = vmatprep.mubr.f32.mxu0 0.0
    %463 = vmatmul.mubr.f32.gmra.mxu0 %v329
    %v464 = vpop.f32.mrf.mxu0
    %v465 = vadd.f32 0.0, %v464
    %v466 = vpop.f32.mrf.mxu0
    %467 = vmatprep.mubr.f32.mxu0 0.0
    %468 = vmatmul.mubr.f32.gmra.mxu0 %v332
    %v469 = vpop.f32.mrf.mxu0
    %v470 = vadd.f32 0.0, %v469
    %v471 = vpop.f32.mrf.mxu0
    %472 = vmatprep.mubr.f32.mxu0 0.0
    %473 = vmatmul.mubr.f32.gmra.mxu0 %v335
    %v474 = vpop.f32.mrf.mxu0
    %v475 = vadd.f32 0.0, %v474
    %v476 = vpop.f32.mrf.mxu0
    %477 = vmatprep.mubr.f32.mxu0 0.0
    %478 = vmatmul.mubr.f32.gmra.mxu0 %v338
    %v479 = vpop.f32.mrf.mxu0
    %v480 = vadd.f32 0.0, %v479
    %v481 = vpop.f32.mrf.mxu0
    %482 = vmatprep.mubr.f32.mxu0 0.0
    %483 = vmatmul.mubr.f32.gmra.mxu0 %v341
    %v484 = vpop.f32.mrf.mxu0
    %v485 = vadd.f32 0.0, %v484
    %v486 = vpop.f32.mrf.mxu0
    %487 = vdwg.mxu0
    %v488 = vld [vmem:[%s1] sm:$0xff]
    %v489 = vld [vmem:[%s1 + $0x8] sm:$0xff]
    %v490 = vld [vmem:[%s1 + $0x10] sm:$0xff]
    %v491 = vld [vmem:[%s1 + $0x18] sm:$0xff]
    %v492 = vld [vmem:[%s1 + $0x20] sm:$0xff]
    %v493 = vld [vmem:[%s1 + $0x28] sm:$0xff]
    %v494 = vld [vmem:[%s1 + $0x30] sm:$0xff]
    %v495 = vld [vmem:[%s1 + $0x38] sm:$0xff]
    %v496 = vld [vmem:[%s1 + $0x40] sm:$0xff]
    %v497 = vld [vmem:[%s1 + $0x48] sm:$0xff]
    %v498 = vld [vmem:[%s1 + $0x50] sm:$0xff]
    %v499 = vld [vmem:[%s1 + $0x58] sm:$0xff]
    %v500 = vld [vmem:[%s1 + $0x60] sm:$0xff]
    %v501 = vld [vmem:[%s1 + $0x68] sm:$0xff]
    %v502 = vld [vmem:[%s1 + $0x70] sm:$0xff]
    %v503 = vld [vmem:[%s1 + $0x78] sm:$0xff]
    %505 = vset.pattern.permute.xlu0 0
    %506 = vperm.xlu0 %505, %v488
    %v507 = vpop.permute.xlu0 %506
    %510 = vset.pattern.permute.xlu0 0
    %511 = vperm.xlu0 %510, %v489
    %v512 = vpop.permute.xlu0 %511
    %515 = vset.pattern.permute.xlu0 0
    %516 = vperm.xlu0 %515, %v490
    %v517 = vpop.permute.xlu0 %516
    %520 = vset.pattern.permute.xlu0 0
    %521 = vperm.xlu0 %520, %v491
    %v522 = vpop.permute.xlu0 %521
    %525 = vset.pattern.permute.xlu0 0
    %526 = vperm.xlu0 %525, %v492
    %v527 = vpop.permute.xlu0 %526
    %530 = vset.pattern.permute.xlu0 0
    %531 = vperm.xlu0 %530, %v493
    %v532 = vpop.permute.xlu0 %531
    %535 = vset.pattern.permute.xlu0 0
    %536 = vperm.xlu0 %535, %v494
    %v537 = vpop.permute.xlu0 %536
    %540 = vset.pattern.permute.xlu0 0
    %541 = vperm.xlu0 %540, %v495
    %v542 = vpop.permute.xlu0 %541
    %545 = vset.pattern.permute.xlu0 0
    %546 = vperm.xlu0 %545, %v496
    %v547 = vpop.permute.xlu0 %546
    %550 = vset.pattern.permute.xlu0 0
    %551 = vperm.xlu0 %550, %v497
    %v552 = vpop.permute.xlu0 %551
    %555 = vset.pattern.permute.xlu0 0
    %556 = vperm.xlu0 %555, %v498
    %v557 = vpop.permute.xlu0 %556
    %560 = vset.pattern.permute.xlu0 0
    %561 = vperm.xlu0 %560, %v499
    %v562 = vpop.permute.xlu0 %561
    %565 = vset.pattern.permute.xlu0 0
    %566 = vperm.xlu0 %565, %v500
    %v567 = vpop.permute.xlu0 %566
    %570 = vset.pattern.permute.xlu0 0
    %571 = vperm.xlu0 %570, %v501
    %v572 = vpop.permute.xlu0 %571
    %575 = vset.pattern.permute.xlu0 0
    %576 = vperm.xlu0 %575, %v502
    %v577 = vpop.permute.xlu0 %576
    %580 = vset.pattern.permute.xlu0 0
    %581 = vperm.xlu0 %580, %v503
    %v582 = vpop.permute.xlu0 %581
    %v584 = vadd.f32 %v410, %v507
    %v585 = vadd.f32 %v415, %v512
    %v586 = vadd.f32 %v420, %v517
    %v587 = vadd.f32 %v425, %v522
    %v588 = vadd.f32 %v430, %v527
    %v589 = vadd.f32 %v435, %v532
    %v590 = vadd.f32 %v440, %v537
    %v591 = vadd.f32 %v445, %v542
    %v592 = vadd.f32 %v450, %v547
    %v593 = vadd.f32 %v455, %v552
    %v594 = vadd.f32 %v460, %v557
    %v595 = vadd.f32 %v465, %v562
    %v596 = vadd.f32 %v470, %v567
    %v597 = vadd.f32 %v475, %v572
    %v598 = vadd.f32 %v480, %v577
    %v599 = vadd.f32 %v485, %v582
    %vm600 = vcmask 31744
    %v601 = vsel %vm600, %v584, -inf
    %v602 = vsel %vm600, %v585, -inf
    %v603 = vmax.f32 %v601, %v602
    %v604 = vrot.slane %v603, 4
    %v605 = vmax.f32 %v603, %v604
    %v606 = vrot.slane %v605, 2
    %v607 = vmax.f32 %v605, %v606
    %v608 = vrot.slane %v607, 1
    %v609 = vmax.f32 %v607, %v608
    %v610 = vsel %vm600, %v586, -inf
    %v611 = vsel %vm600, %v587, -inf
    %v612 = vmax.f32 %v610, %v611
    %v613 = vrot.slane %v612, 4
    %v614 = vmax.f32 %v612, %v613
    %v615 = vrot.slane %v614, 2
    %v616 = vmax.f32 %v614, %v615
    %v617 = vrot.slane %v616, 1
    %v618 = vmax.f32 %v616, %v617
    %v619 = vsel %vm600, %v588, -inf
    %v620 = vsel %vm600, %v589, -inf
    %v621 = vmax.f32 %v619, %v620
    %v622 = vrot.slane %v621, 4
    %v623 = vmax.f32 %v621, %v622
    %v624 = vrot.slane %v623, 2
    %v625 = vmax.f32 %v623, %v624
    %v626 = vrot.slane %v625, 1
    %v627 = vmax.f32 %v625, %v626
    %v628 = vsel %vm600, %v590, -inf
    %v629 = vsel %vm600, %v591, -inf
    %v630 = vmax.f32 %v628, %v629
    %v631 = vrot.slane %v630, 4
    %v632 = vmax.f32 %v630, %v631
    %v633 = vrot.slane %v632, 2
    %v634 = vmax.f32 %v632, %v633
    %v635 = vrot.slane %v634, 1
    %v636 = vmax.f32 %v634, %v635
    %v637 = vsel %vm600, %v592, -inf
    %v638 = vsel %vm600, %v593, -inf
    %v639 = vmax.f32 %v637, %v638
    %v640 = vrot.slane %v639, 4
    %v641 = vmax.f32 %v639, %v640
    %v642 = vrot.slane %v641, 2
    %v643 = vmax.f32 %v641, %v642
    %v644 = vrot.slane %v643, 1
    %v645 = vmax.f32 %v643, %v644
    %v646 = vsel %vm600, %v594, -inf
    %v647 = vsel %vm600, %v595, -inf
    %v648 = vmax.f32 %v646, %v647
    %v649 = vrot.slane %v648, 4
    %v650 = vmax.f32 %v648, %v649
    %v651 = vrot.slane %v650, 2
    %v652 = vmax.f32 %v650, %v651
    %v653 = vrot.slane %v652, 1
    %v654 = vmax.f32 %v652, %v653
    %v655 = vsel %vm600, %v596, -inf
    %v656 = vsel %vm600, %v597, -inf
    %v657 = vmax.f32 %v655, %v656
    %v658 = vrot.slane %v657, 4
    %v659 = vmax.f32 %v657, %v658
    %v660 = vrot.slane %v659, 2
    %v661 = vmax.f32 %v659, %v660
    %v662 = vrot.slane %v661, 1
    %v663 = vmax.f32 %v661, %v662
    %v664 = vsel %vm600, %v598, -inf
    %v665 = vsel %vm600, %v599, -inf
    %v666 = vmax.f32 %v664, %v665
    %v667 = vrot.slane %v666, 4
    %v668 = vmax.f32 %v666, %v667
    %v669 = vrot.slane %v668, 2
    %v670 = vmax.f32 %v668, %v669
    %v671 = vrot.slane %v670, 1
    %v672 = vmax.f32 %v670, %v671
    %v673 = vsub.f32 %v584, %v609
    %v674 = vsub.f32 %v585, %v609
    %v675 = vsub.f32 %v586, %v618
    %v676 = vsub.f32 %v587, %v618
    %v677 = vsub.f32 %v588, %v627
    %v678 = vsub.f32 %v589, %v627
    %v679 = vsub.f32 %v590, %v636
    %v680 = vsub.f32 %v591, %v636
    %v681 = vsub.f32 %v592, %v645
    %v682 = vsub.f32 %v593, %v645
    %v683 = vsub.f32 %v594, %v654
    %v684 = vsub.f32 %v595, %v654
    %v685 = vsub.f32 %v596, %v663
    %v686 = vsub.f32 %v597, %v663
    %v687 = vsub.f32 %v598, %v672
    %v688 = vsub.f32 %v599, %v672
    %v689 = vmul.f32 %v673, 1.442695
    %v690 = vpow.pop %v689
    %v691 = vmul.f32 %v674, 1.442695
    %v692 = vpow.pop %v691
    %v693 = vmul.f32 %v675, 1.442695
    %v694 = vpow.pop %v693
    %v695 = vmul.f32 %v676, 1.442695
    %v696 = vpow.pop %v695
    %v697 = vmul.f32 %v677, 1.442695
    %v698 = vpow.pop %v697
    %v699 = vmul.f32 %v678, 1.442695
    %v700 = vpow.pop %v699
    %v701 = vmul.f32 %v679, 1.442695
    %v702 = vpow.pop %v701
    %v703 = vmul.f32 %v680, 1.442695
    %v704 = vpow.pop %v703
    %v705 = vmul.f32 %v681, 1.442695
    %v706 = vpow.pop %v705
    %v707 = vmul.f32 %v682, 1.442695
    %v708 = vpow.pop %v707
    %v709 = vmul.f32 %v683, 1.442695
    %v710 = vpow.pop %v709
    %v711 = vmul.f32 %v684, 1.442695
    %v712 = vpow.pop %v711
    %v713 = vmul.f32 %v685, 1.442695
    %v714 = vpow.pop %v713
    %v715 = vmul.f32 %v686, 1.442695
    %v716 = vpow.pop %v715
    %v717 = vmul.f32 %v687, 1.442695
    %v718 = vpow.pop %v717
    %v719 = vmul.f32 %v688, 1.442695
    %v720 = vpow.pop %v719
    %v721 = vsel %vm600, %v690, 0.0
    %v722 = vsel %vm600, %v692, 0.0
    %v723 = vadd.f32 %v721, %v722
    %v724 = vrot.slane %v723, 4
    %v725 = vadd.f32 %v723, %v724
    %v726 = vrot.slane %v725, 2
    %v727 = vadd.f32 %v725, %v726
    %v728 = vrot.slane %v727, 1
    %v729 = vadd.f32 %v727, %v728
    %v730 = vsel %vm600, %v694, 0.0
    %v731 = vsel %vm600, %v696, 0.0
    %v732 = vadd.f32 %v730, %v731
    %v733 = vrot.slane %v732, 4
    %v734 = vadd.f32 %v732, %v733
    %v735 = vrot.slane %v734, 2
    %v736 = vadd.f32 %v734, %v735
    %v737 = vrot.slane %v736, 1
    %v738 = vadd.f32 %v736, %v737
    %v739 = vsel %vm600, %v698, 0.0
    %v740 = vsel %vm600, %v700, 0.0
    %v741 = vadd.f32 %v739, %v740
    %v742 = vrot.slane %v741, 4
    %v743 = vadd.f32 %v741, %v742
    %v744 = vrot.slane %v743, 2
    %v745 = vadd.f32 %v743, %v744
    %v746 = vrot.slane %v745, 1
    %v747 = vadd.f32 %v745, %v746
    %v748 = vsel %vm600, %v702, 0.0
    %v749 = vsel %vm600, %v704, 0.0
    %v750 = vadd.f32 %v748, %v749
    %v751 = vrot.slane %v750, 4
    %v752 = vadd.f32 %v750, %v751
    %v753 = vrot.slane %v752, 2
    %v754 = vadd.f32 %v752, %v753
    %v755 = vrot.slane %v754, 1
    %v756 = vadd.f32 %v754, %v755
    %v757 = vsel %vm600, %v706, 0.0
    %v758 = vsel %vm600, %v708, 0.0
    %v759 = vadd.f32 %v757, %v758
    %v760 = vrot.slane %v759, 4
    %v761 = vadd.f32 %v759, %v760
    %v762 = vrot.slane %v761, 2
    %v763 = vadd.f32 %v761, %v762
    %v764 = vrot.slane %v763, 1
    %v765 = vadd.f32 %v763, %v764
    %v766 = vsel %vm600, %v710, 0.0
    %v767 = vsel %vm600, %v712, 0.0
    %v768 = vadd.f32 %v766, %v767
    %v769 = vrot.slane %v768, 4
    %v770 = vadd.f32 %v768, %v769
    %v771 = vrot.slane %v770, 2
    %v772 = vadd.f32 %v770, %v771
    %v773 = vrot.slane %v772, 1
    %v774 = vadd.f32 %v772, %v773
    %v775 = vsel %vm600, %v714, 0.0
    %v776 = vsel %vm600, %v716, 0.0
    %v777 = vadd.f32 %v775, %v776
    %v778 = vrot.slane %v777, 4
    %v779 = vadd.f32 %v777, %v778
    %v780 = vrot.slane %v779, 2
    %v781 = vadd.f32 %v779, %v780
    %v782 = vrot.slane %v781, 1
    %v783 = vadd.f32 %v781, %v782
    %v784 = vsel %vm600, %v718, 0.0
    %v785 = vsel %vm600, %v720, 0.0
    %v786 = vadd.f32 %v784, %v785
    %v787 = vrot.slane %v786, 4
    %v788 = vadd.f32 %v786, %v787
    %v789 = vrot.slane %v788, 2
    %v790 = vadd.f32 %v788, %v789
    %v791 = vrot.slane %v790, 1
    %v792 = vadd.f32 %v790, %v791
    %v793 = vrcp.pop %v729
    %v794 = vrcp.pop %v738
    %v795 = vrcp.pop %v747
    %v796 = vrcp.pop %v756
    %v797 = vrcp.pop %v765
    %v798 = vrcp.pop %v774
    %v799 = vrcp.pop %v783
    %v800 = vrcp.pop %v792
    %v801 = vmul.f32 %v690, %v793
    %v802 = vmul.f32 %v692, %v793
    %v803 = vmul.f32 %v694, %v794
    %v804 = vmul.f32 %v696, %v794
    %v805 = vmul.f32 %v698, %v795
    %v806 = vmul.f32 %v700, %v795
    %v807 = vmul.f32 %v702, %v796
    %v808 = vmul.f32 %v704, %v796
    %v809 = vmul.f32 %v706, %v797
    %v810 = vmul.f32 %v708, %v797
    %v811 = vmul.f32 %v710, %v798
    %v812 = vmul.f32 %v712, %v798
    %v813 = vmul.f32 %v714, %v799
    %v814 = vmul.f32 %v716, %v799
    %v815 = vmul.f32 %v718, %v800
    %v816 = vmul.f32 %v720, %v800
    %v817 = vld [vmem:[%s5] sm:$0xf]
    %v819 = vsel %vm600, %v801, 0
    %v822 = vsel %vm600, %v802, 0
    %v825 = vsel %vm600, %v803, 0
    %v828 = vsel %vm600, %v804, 0
    %v831 = vsel %vm600, %v805, 0
    %v834 = vsel %vm600, %v806, 0
    %v837 = vsel %vm600, %v807, 0
    %v840 = vsel %vm600, %v808, 0
    %v843 = vsel %vm600, %v809, 0
    %v846 = vsel %vm600, %v810, 0
    %v849 = vsel %vm600, %v811, 0
    %v852 = vsel %vm600, %v812, 0
    %v855 = vsel %vm600, %v813, 0
    %v858 = vsel %vm600, %v814, 0
    %v861 = vsel %vm600, %v815, 0
    %v864 = vsel %vm600, %v816, 0
    %vm866 = vcmask 1043456
    %v868 = vsel %vm866, %v817, 0
    %870 = vmatprep.subr.mxu0 0.0
    %871 = vmatpush1.msra.mxu0 0.0
    %872 = vmatprep.subr.mxu0 0.0
    %873 = vmatpush1.msra.mxu0 0.0
    %874 = vmatprep.subr.mxu0 0.0
    %875 = vmatpush1.msra.mxu0 0.0
    %876 = vmatprep.subr.mxu0 0.0
    %877 = vmatpush1.msra.mxu0 0.0
    %878 = vmatprep.subr.mxu0 0.0
    %879 = vmatpush1.msra.mxu0 0.0
    %880 = vmatprep.subr.mxu0 0.0
    %881 = vmatpush1.msra.mxu0 0.0
    %882 = vmatprep.subr.mxu0 0.0
    %883 = vmatpush1.msra.mxu0 0.0
    %884 = vmatprep.subr.mxu0 0.0
    %885 = vmatpush1.msra.mxu0 0.0
    %886 = vmatprep.subr.mxu0 0.0
    %887 = vmatpush1.msra.mxu0 0.0
    %888 = vmatprep.subr.mxu0 0.0
    %889 = vmatpush1.msra.mxu0 0.0
    %890 = vmatprep.subr.mxu0 0.0
    %891 = vmatpush1.msra.mxu0 0.0
    %892 = vmatprep.subr.mxu0 0.0
    %893 = vmatpush1.msra.mxu0 0.0
    %894 = vmatprep.subr.mxu0 0.0
    %895 = vmatpush1.msra.mxu0 0.0
    %896 = vmatprep.subr.mxu0 0.0
    %897 = vmatpush1.msra.mxu0 0.0
    %898 = vmatprep.subr.mxu0 0.0
    %899 = vmatpush1.msra.mxu0 0.0
    %900 = vmatprep.subr.mxu0 0.0
    %901 = vmatpush1.msra.mxu0 %v868
    %902 = vmatprep.subr.mxu0 0.0
    %903 = vmatpush2.msra.mxu0 0.0
    %904 = vmatprep.subr.mxu0 0.0
    %905 = vmatpush2.msra.mxu0 0.0
    %906 = vmatprep.subr.mxu0 0.0
    %907 = vmatpush2.msra.mxu0 0.0
    %908 = vmatprep.subr.mxu0 0.0
    %909 = vmatpush2.msra.mxu0 0.0
    %910 = vmatprep.subr.mxu0 0.0
    %911 = vmatpush2.msra.mxu0 0.0
    %912 = vmatprep.subr.mxu0 0.0
    %913 = vmatpush2.msra.mxu0 0.0
    %914 = vmatprep.subr.mxu0 0.0
    %915 = vmatpush2.msra.mxu0 0.0
    %916 = vmatprep.subr.mxu0 0.0
    %917 = vmatpush2.msra.mxu0 0.0
    %918 = vmatprep.subr.mxu0 0.0
    %919 = vmatpush2.msra.mxu0 0.0
    %920 = vmatprep.subr.mxu0 0.0
    %921 = vmatpush2.msra.mxu0 0.0
    %922 = vmatprep.subr.mxu0 0.0
    %923 = vmatpush2.msra.mxu0 0.0
    %924 = vmatprep.subr.mxu0 0.0
    %925 = vmatpush2.msra.mxu0 0.0
    %926 = vmatprep.subr.mxu0 0.0
    %927 = vmatpush2.msra.mxu0 0.0
    %928 = vmatprep.subr.mxu0 0.0
    %929 = vmatpush2.msra.mxu0 0.0
    %930 = vmatprep.subr.mxu0 0.0
    %931 = vmatpush2.msra.mxu0 0.0
    %932 = vmatprep.subr.mxu0 0.0
    %933 = vmatpush2.msra.mxu0 0.0
    %934 = vmatprep.mubr.f32.mxu0 0.0
    %935 = vmatmul.mubr.f32.gmra.mxu0 %v819
    %v936 = vpop.f32.mrf.mxu0
    %v937 = vadd.f32 0.0, %v936
    %v938 = vpop.f32.mrf.mxu0
    %939 = vmatprep.mubr.f32.mxu0 0.0
    %940 = vmatmul.mubr.f32.gmra.mxu0 %v822
    %v941 = vpop.f32.mrf.mxu0
    %v942 = vadd.f32 0.0, %v941
    %v943 = vpop.f32.mrf.mxu0
    %944 = vmatprep.mubr.f32.mxu0 0.0
    %945 = vmatmul.mubr.f32.gmra.mxu0 %v825
    %v946 = vpop.f32.mrf.mxu0
    %v947 = vadd.f32 0.0, %v946
    %v948 = vpop.f32.mrf.mxu0
    %949 = vmatprep.mubr.f32.mxu0 0.0
    %950 = vmatmul.mubr.f32.gmra.mxu0 %v828
    %v951 = vpop.f32.mrf.mxu0
    %v952 = vadd.f32 0.0, %v951
    %v953 = vpop.f32.mrf.mxu0
    %954 = vmatprep.mubr.f32.mxu0 0.0
    %955 = vmatmul.mubr.f32.gmra.mxu0 %v831
    %v956 = vpop.f32.mrf.mxu0
    %v957 = vadd.f32 0.0, %v956
    %v958 = vpop.f32.mrf.mxu0
    %959 = vmatprep.mubr.f32.mxu0 0.0
    %960 = vmatmul.mubr.f32.gmra.mxu0 %v834
    %v961 = vpop.f32.mrf.mxu0
    %v962 = vadd.f32 0.0, %v961
    %v963 = vpop.f32.mrf.mxu0
    %964 = vmatprep.mubr.f32.mxu0 0.0
    %965 = vmatmul.mubr.f32.gmra.mxu0 %v837
    %v966 = vpop.f32.mrf.mxu0
    %v967 = vadd.f32 0.0, %v966
    %v968 = vpop.f32.mrf.mxu0
    %969 = vmatprep.mubr.f32.mxu0 0.0
    %970 = vmatmul.mubr.f32.gmra.mxu0 %v840
    %v971 = vpop.f32.mrf.mxu0
    %v972 = vadd.f32 0.0, %v971
    %v973 = vpop.f32.mrf.mxu0
    %974 = vmatprep.mubr.f32.mxu0 0.0
    %975 = vmatmul.mubr.f32.gmra.mxu0 %v843
    %v976 = vpop.f32.mrf.mxu0
    %v977 = vadd.f32 0.0, %v976
    %v978 = vpop.f32.mrf.mxu0
    %979 = vmatprep.mubr.f32.mxu0 0.0
    %980 = vmatmul.mubr.f32.gmra.mxu0 %v846
    %v981 = vpop.f32.mrf.mxu0
    %v982 = vadd.f32 0.0, %v981
    %v983 = vpop.f32.mrf.mxu0
    %984 = vmatprep.mubr.f32.mxu0 0.0
    %985 = vmatmul.mubr.f32.gmra.mxu0 %v849
    %v986 = vpop.f32.mrf.mxu0
    %v987 = vadd.f32 0.0, %v986
    %v988 = vpop.f32.mrf.mxu0
    %989 = vmatprep.mubr.f32.mxu0 0.0
    %990 = vmatmul.mubr.f32.gmra.mxu0 %v852
    %v991 = vpop.f32.mrf.mxu0
    %v992 = vadd.f32 0.0, %v991
    %v993 = vpop.f32.mrf.mxu0
    %994 = vmatprep.mubr.f32.mxu0 0.0
    %995 = vmatmul.mubr.f32.gmra.mxu0 %v855
    %v996 = vpop.f32.mrf.mxu0
    %v997 = vadd.f32 0.0, %v996
    %v998 = vpop.f32.mrf.mxu0
    %999 = vmatprep.mubr.f32.mxu0 0.0
    %1000 = vmatmul.mubr.f32.gmra.mxu0 %v858
    %v1001 = vpop.f32.mrf.mxu0
    %v1002 = vadd.f32 0.0, %v1001
    %v1003 = vpop.f32.mrf.mxu0
    %1004 = vmatprep.mubr.f32.mxu0 0.0
    %1005 = vmatmul.mubr.f32.gmra.mxu0 %v861
    %v1006 = vpop.f32.mrf.mxu0
    %v1007 = vadd.f32 0.0, %v1006
    %v1008 = vpop.f32.mrf.mxu0
    %1009 = vmatprep.mubr.f32.mxu0 0.0
    %1010 = vmatmul.mubr.f32.gmra.mxu0 %v864
    %v1011 = vpop.f32.mrf.mxu0
    %v1012 = vadd.f32 0.0, %v1011
    %v1013 = vpop.f32.mrf.mxu0
    %1014 = vdwg.mxu0
    %1015 = vrot.lane.b32.xlu0 %v274, 96
    %v1016 = vpop.permute.xlu0 %1015
    %1017 = vrot.lane.b32.xlu0 %v275, 96
    %v1018 = vpop.permute.xlu0 %1017
    %1019 = vrot.lane.b32.xlu0 %v276, 96
    %v1020 = vpop.permute.xlu0 %1019
    %1021 = vrot.lane.b32.xlu0 %v277, 96
    %v1022 = vpop.permute.xlu0 %1021
    %1023 = vrot.lane.b32.xlu0 %v278, 96
    %v1024 = vpop.permute.xlu0 %1023
    %1025 = vrot.lane.b32.xlu0 %v279, 96
    %v1026 = vpop.permute.xlu0 %1025
    %1027 = vrot.lane.b32.xlu0 %v280, 96
    %v1028 = vpop.permute.xlu0 %1027
    %1029 = vrot.lane.b32.xlu0 %v281, 96
    %v1030 = vpop.permute.xlu0 %1029
    %1031 = vrot.lane.b32.xlu0 %v282, 96
    %v1032 = vpop.permute.xlu0 %1031
    %1033 = vrot.lane.b32.xlu0 %v283, 96
    %v1034 = vpop.permute.xlu0 %1033
    %1035 = vrot.lane.b32.xlu0 %v284, 96
    %v1036 = vpop.permute.xlu0 %1035
    %1037 = vrot.lane.b32.xlu0 %v285, 96
    %v1038 = vpop.permute.xlu0 %1037
    %1039 = vrot.lane.b32.xlu0 %v286, 96
    %v1040 = vpop.permute.xlu0 %1039
    %1041 = vrot.lane.b32.xlu0 %v287, 96
    %v1042 = vpop.permute.xlu0 %1041
    %1043 = vrot.lane.b32.xlu0 %v288, 96
    %v1044 = vpop.permute.xlu0 %1043
    %1045 = vrot.lane.b32.xlu0 %v289, 96
    %v1046 = vpop.permute.xlu0 %1045
    %v1063 = vmul.f32 %v937, %v1016
    %v1064 = vmul.f32 %v942, %v1018
    %v1065 = vmul.f32 %v947, %v1020
    %v1066 = vmul.f32 %v952, %v1022
    %v1067 = vmul.f32 %v957, %v1024
    %v1068 = vmul.f32 %v962, %v1026
    %v1069 = vmul.f32 %v967, %v1028
    %v1070 = vmul.f32 %v972, %v1030
    %v1071 = vmul.f32 %v977, %v1032
    %v1072 = vmul.f32 %v982, %v1034
    %v1073 = vmul.f32 %v987, %v1036
    %v1074 = vmul.f32 %v992, %v1038
    %v1075 = vmul.f32 %v997, %v1040
    %v1076 = vmul.f32 %v1002, %v1042
    %v1077 = vmul.f32 %v1007, %v1044
    %v1078 = vmul.f32 %v1012, %v1046
    %v1079 = vsel %vm294, %v1063, 0.0
    %v1080 = vsel %vm294, %v1064, 0.0
    %v1081 = vadd.f32 %v1079, %v1080
    %v1082 = vrot.slane %v1081, 4
    %v1083 = vadd.f32 %v1081, %v1082
    %v1084 = vrot.slane %v1083, 2
    %v1085 = vadd.f32 %v1083, %v1084
    %v1086 = vrot.slane %v1085, 1
    %v1087 = vadd.f32 %v1085, %v1086
    %v1088 = vsel %vm294, %v1065, 0.0
    %v1089 = vsel %vm294, %v1066, 0.0
    %v1090 = vadd.f32 %v1088, %v1089
    %v1091 = vrot.slane %v1090, 4
    %v1092 = vadd.f32 %v1090, %v1091
    %v1093 = vrot.slane %v1092, 2
    %v1094 = vadd.f32 %v1092, %v1093
    %v1095 = vrot.slane %v1094, 1
    %v1096 = vadd.f32 %v1094, %v1095
    %v1097 = vsel %vm294, %v1067, 0.0
    %v1098 = vsel %vm294, %v1068, 0.0
    %v1099 = vadd.f32 %v1097, %v1098
    %v1100 = vrot.slane %v1099, 4
    %v1101 = vadd.f32 %v1099, %v1100
    %v1102 = vrot.slane %v1101, 2
    %v1103 = vadd.f32 %v1101, %v1102
    %v1104 = vrot.slane %v1103, 1
    %v1105 = vadd.f32 %v1103, %v1104
    %v1106 = vsel %vm294, %v1069, 0.0
    %v1107 = vsel %vm294, %v1070, 0.0
    %v1108 = vadd.f32 %v1106, %v1107
    %v1109 = vrot.slane %v1108, 4
    %v1110 = vadd.f32 %v1108, %v1109
    %v1111 = vrot.slane %v1110, 2
    %v1112 = vadd.f32 %v1110, %v1111
    %v1113 = vrot.slane %v1112, 1
    %v1114 = vadd.f32 %v1112, %v1113
    %v1115 = vsel %vm294, %v1071, 0.0
    %v1116 = vsel %vm294, %v1072, 0.0
    %v1117 = vadd.f32 %v1115, %v1116
    %v1118 = vrot.slane %v1117, 4
    %v1119 = vadd.f32 %v1117, %v1118
    %v1120 = vrot.slane %v1119, 2
    %v1121 = vadd.f32 %v1119, %v1120
    %v1122 = vrot.slane %v1121, 1
    %v1123 = vadd.f32 %v1121, %v1122
    %v1124 = vsel %vm294, %v1073, 0.0
    %v1125 = vsel %vm294, %v1074, 0.0
    %v1126 = vadd.f32 %v1124, %v1125
    %v1127 = vrot.slane %v1126, 4
    %v1128 = vadd.f32 %v1126, %v1127
    %v1129 = vrot.slane %v1128, 2
    %v1130 = vadd.f32 %v1128, %v1129
    %v1131 = vrot.slane %v1130, 1
    %v1132 = vadd.f32 %v1130, %v1131
    %v1133 = vsel %vm294, %v1075, 0.0
    %v1134 = vsel %vm294, %v1076, 0.0
    %v1135 = vadd.f32 %v1133, %v1134
    %v1136 = vrot.slane %v1135, 4
    %v1137 = vadd.f32 %v1135, %v1136
    %v1138 = vrot.slane %v1137, 2
    %v1139 = vadd.f32 %v1137, %v1138
    %v1140 = vrot.slane %v1139, 1
    %v1141 = vadd.f32 %v1139, %v1140
    %v1142 = vsel %vm294, %v1077, 0.0
    %v1143 = vsel %vm294, %v1078, 0.0
    %v1144 = vadd.f32 %v1142, %v1143
    %v1145 = vrot.slane %v1144, 4
    %v1146 = vadd.f32 %v1144, %v1145
    %v1147 = vrot.slane %v1146, 2
    %v1148 = vadd.f32 %v1146, %v1147
    %v1149 = vrot.slane %v1148, 1
    %v1150 = vadd.f32 %v1148, %v1149
    %v1151 = vld [vmem:[%s7] sm:$0xff]
    %v1152 = vld [vmem:[%s7 + $0x8] sm:$0xff]
    %v1153 = vld [vmem:[%s7 + $0x10] sm:$0xff]
    %v1154 = vld [vmem:[%s7 + $0x18] sm:$0xff]
    %v1155 = vld [vmem:[%s8] sm:$0x1]
    %v1157 = vlaneseq
    %v1158 = vshrl.u32 %v1157, 7
    %v1159 = vsub.s32 0, %v1158
    %v1160 = vrot.slane %v1155, %v1159
    %vm1170 = vcmask 1041409
    %v1171 = vsel %vm1170, %v1096, %v1087
    %vm1172 = vcmask 1042434
    %v1173 = vsel %vm1172, %v1105, %v1171
    %vm1174 = vcmask 1043459
    %v1175 = vsel %vm1174, %v1114, %v1173
    %vm1176 = vcmask 1044484
    %v1177 = vsel %vm1176, %v1123, %v1175
    %vm1178 = vcmask 1045509
    %v1179 = vsel %vm1178, %v1132, %v1177
    %vm1180 = vcmask 1046534
    %v1181 = vsel %vm1180, %v1141, %v1179
    %vm1182 = vcmask 1047559
    %v1183 = vsel %vm1182, %v1150, %v1181
    %v1184 = vsel %vm294, %v1183, 0
    %1186 = vmatprep.subr.mxu0 0.0
    %1187 = vmatpush1.msra.mxu0 0.0
    %1188 = vmatprep.subr.mxu0 0.0
    %1189 = vmatpush1.msra.mxu0 0.0
    %1190 = vmatprep.subr.mxu0 0.0
    %1191 = vmatpush1.msra.mxu0 0.0
    %1192 = vmatprep.subr.mxu0 0.0
    %1193 = vmatpush1.msra.mxu0 0.0
    %1194 = vmatprep.subr.mxu0 0.0
    %1195 = vmatpush1.msra.mxu0 0.0
    %1196 = vmatprep.subr.mxu0 0.0
    %1197 = vmatpush1.msra.mxu0 0.0
    %1198 = vmatprep.subr.mxu0 0.0
    %1199 = vmatpush1.msra.mxu0 0.0
    %1200 = vmatprep.subr.mxu0 0.0
    %1201 = vmatpush1.msra.mxu0 0.0
    %1202 = vmatprep.subr.mxu0 0.0
    %1203 = vmatpush1.msra.mxu0 0.0
    %1204 = vmatprep.subr.mxu0 0.0
    %1205 = vmatpush1.msra.mxu0 0.0
    %1206 = vmatprep.subr.mxu0 0.0
    %1207 = vmatpush1.msra.mxu0 0.0
    %1208 = vmatprep.subr.mxu0 0.0
    %1209 = vmatpush1.msra.mxu0 0.0
    %1210 = vmatprep.subr.mxu0 0.0
    %1211 = vmatpush1.msra.mxu0 %v1154
    %1212 = vmatprep.subr.mxu0 0.0
    %1213 = vmatpush1.msra.mxu0 %v1153
    %1214 = vmatprep.subr.mxu0 0.0
    %1215 = vmatpush1.msra.mxu0 %v1152
    %1216 = vmatprep.subr.mxu0 0.0
    %1217 = vmatpush1.msra.mxu0 %v1151
    %1218 = vmatprep.subr.mxu0 0.0
    %1219 = vmatpush2.msra.mxu0 0.0
    %1220 = vmatprep.subr.mxu0 0.0
    %1221 = vmatpush2.msra.mxu0 0.0
    %1222 = vmatprep.subr.mxu0 0.0
    %1223 = vmatpush2.msra.mxu0 0.0
    %1224 = vmatprep.subr.mxu0 0.0
    %1225 = vmatpush2.msra.mxu0 0.0
    %1226 = vmatprep.subr.mxu0 0.0
    %1227 = vmatpush2.msra.mxu0 0.0
    %1228 = vmatprep.subr.mxu0 0.0
    %1229 = vmatpush2.msra.mxu0 0.0
    %1230 = vmatprep.subr.mxu0 0.0
    %1231 = vmatpush2.msra.mxu0 0.0
    %1232 = vmatprep.subr.mxu0 0.0
    %1233 = vmatpush2.msra.mxu0 0.0
    %1234 = vmatprep.subr.mxu0 0.0
    %1235 = vmatpush2.msra.mxu0 0.0
    %1236 = vmatprep.subr.mxu0 0.0
    %1237 = vmatpush2.msra.mxu0 0.0
    %1238 = vmatprep.subr.mxu0 0.0
    %1239 = vmatpush2.msra.mxu0 0.0
    %1240 = vmatprep.subr.mxu0 0.0
    %1241 = vmatpush2.msra.mxu0 0.0
    %1242 = vmatprep.subr.mxu0 0.0
    %1243 = vmatpush2.msra.mxu0 0.0
    %1244 = vmatprep.subr.mxu0 0.0
    %1245 = vmatpush2.msra.mxu0 0.0
    %1246 = vmatprep.subr.mxu0 0.0
    %1247 = vmatpush2.msra.mxu0 0.0
    %1248 = vmatprep.subr.mxu0 0.0
    %1249 = vmatpush2.msra.mxu0 0.0
    %1250 = vmatprep.mubr.f32.mxu0 0.0
    %1251 = vmatmul.mubr.f32.gmra.mxu0 %v1184
    %v1252 = vpop.f32.mrf.mxu0
    %v1253 = vadd.f32 %v1160, %v1252
    %v1254 = vpop.f32.mrf.mxu0
    %1255 = vdwg.mxu0
    %v1256 = vld [vmem:[%s6] sm:$0x1]
    %v1258 = vlaneseq
    %v1259 = vshrl.u32 %v1258, 7
    %v1260 = vsub.s32 0, %v1259
    %v1261 = vrot.slane %v1256, %v1260
    %v1263 = vadd.f32 %v1261, %v1253
    %v1264 = vsel %vm294, %v1263, 0.0
    %1265 = vadd.xlane.f32.xlu0 %v1264
    %v1266 = vpop.xlane.xlu0 %1265
    %v1267 = vrcp.pop 32.0
    %v1268 = vmul.f32 %v1266, %v1267
    %v1269 = vsub.f32 %v1263, %v1268
    %v1270 = vmul.f32 %v1269, %v1269
    %v1271 = vsel %vm294, %v1270, 0.0
    %1272 = vadd.xlane.f32.xlu0 %v1271
    %v1273 = vpop.xlane.xlu0 %1272
    %v1274 = vmul.f32 %v1273, %v1267
    %v1275 = vadd.f32 %v1274, 1e-05
    %v1276 = vrsqrt.pop %v1275
    %v1277 = vmul.f32 %v1269, %v1276
    %v1278 = vld [vmem:[%s9] sm:$0x1]
    %v1280 = vlaneseq
    %v1281 = vshrl.u32 %v1280, 7
    %v1282 = vsub.s32 0, %v1281
    %v1283 = vrot.slane %v1278, %v1282
    %v1285 = vmul.f32 %v1277, %v1283
    %v1286 = vld [vmem:[%s10] sm:$0x1]
    %v1288 = vlaneseq
    %v1289 = vshrl.u32 %v1288, 7
    %v1290 = vsub.s32 0, %v1289
    %v1291 = vrot.slane %v1286, %v1290
    %v1293 = vadd.f32 %v1285, %v1291
    %v1294 = vld [vmem:[%s11] sm:$0xff]
    %v1295 = vld [vmem:[%s11 + $0x8] sm:$0xff]
    %v1296 = vld [vmem:[%s11 + $0x10] sm:$0xff]
    %v1297 = vld [vmem:[%s11 + $0x18] sm:$0xff]
    %v1298 = vld [vmem:[%s12] sm:$0x1]
    %v1300 = vlaneseq
    %v1301 = vshrl.u32 %v1300, 7
    %v1302 = vsub.s32 0, %v1301
    %v1303 = vrot.slane %v1298, %v1302
    %v1306 = vsel %vm294, %v1293, 0
    %1308 = vmatprep.subr.mxu0 0.0
    %1309 = vmatpush1.msra.mxu0 0.0
    %1310 = vmatprep.subr.mxu0 0.0
    %1311 = vmatpush1.msra.mxu0 0.0
    %1312 = vmatprep.subr.mxu0 0.0
    %1313 = vmatpush1.msra.mxu0 0.0
    %1314 = vmatprep.subr.mxu0 0.0
    %1315 = vmatpush1.msra.mxu0 0.0
    %1316 = vmatprep.subr.mxu0 0.0
    %1317 = vmatpush1.msra.mxu0 0.0
    %1318 = vmatprep.subr.mxu0 0.0
    %1319 = vmatpush1.msra.mxu0 0.0
    %1320 = vmatprep.subr.mxu0 0.0
    %1321 = vmatpush1.msra.mxu0 0.0
    %1322 = vmatprep.subr.mxu0 0.0
    %1323 = vmatpush1.msra.mxu0 0.0
    %1324 = vmatprep.subr.mxu0 0.0
    %1325 = vmatpush1.msra.mxu0 0.0
    %1326 = vmatprep.subr.mxu0 0.0
    %1327 = vmatpush1.msra.mxu0 0.0
    %1328 = vmatprep.subr.mxu0 0.0
    %1329 = vmatpush1.msra.mxu0 0.0
    %1330 = vmatprep.subr.mxu0 0.0
    %1331 = vmatpush1.msra.mxu0 0.0
    %1332 = vmatprep.subr.mxu0 0.0
    %1333 = vmatpush1.msra.mxu0 %v1297
    %1334 = vmatprep.subr.mxu0 0.0
    %1335 = vmatpush1.msra.mxu0 %v1296
    %1336 = vmatprep.subr.mxu0 0.0
    %1337 = vmatpush1.msra.mxu0 %v1295
    %1338 = vmatprep.subr.mxu0 0.0
    %1339 = vmatpush1.msra.mxu0 %v1294
    %1340 = vmatprep.subr.mxu0 0.0
    %1341 = vmatpush2.msra.mxu0 0.0
    %1342 = vmatprep.subr.mxu0 0.0
    %1343 = vmatpush2.msra.mxu0 0.0
    %1344 = vmatprep.subr.mxu0 0.0
    %1345 = vmatpush2.msra.mxu0 0.0
    %1346 = vmatprep.subr.mxu0 0.0
    %1347 = vmatpush2.msra.mxu0 0.0
    %1348 = vmatprep.subr.mxu0 0.0
    %1349 = vmatpush2.msra.mxu0 0.0
    %1350 = vmatprep.subr.mxu0 0.0
    %1351 = vmatpush2.msra.mxu0 0.0
    %1352 = vmatprep.subr.mxu0 0.0
    %1353 = vmatpush2.msra.mxu0 0.0
    %1354 = vmatprep.subr.mxu0 0.0
    %1355 = vmatpush2.msra.mxu0 0.0
    %1356 = vmatprep.subr.mxu0 0.0
    %1357 = vmatpush2.msra.mxu0 0.0
    %1358 = vmatprep.subr.mxu0 0.0
    %1359 = vmatpush2.msra.mxu0 0.0
    %1360 = vmatprep.subr.mxu0 0.0
    %1361 = vmatpush2.msra.mxu0 0.0
    %1362 = vmatprep.subr.mxu0 0.0
    %1363 = vmatpush2.msra.mxu0 0.0
    %1364 = vmatprep.subr.mxu0 0.0
    %1365 = vmatpush2.msra.mxu0 0.0
    %1366 = vmatprep.subr.mxu0 0.0
    %1367 = vmatpush2.msra.mxu0 0.0
    %1368 = vmatprep.subr.mxu0 0.0
    %1369 = vmatpush2.msra.mxu0 0.0
    %1370 = vmatprep.subr.mxu0 0.0
    %1371 = vmatpush2.msra.mxu0 0.0
    %1372 = vmatprep.mubr.f32.mxu0 0.0
    %1373 = vmatmul.mubr.f32.gmra.mxu0 %v1306
    %v1374 = vpop.f32.mrf.mxu0
    %v1375 = vadd.f32 %v1303, %v1374
    %v1376 = vpop.f32.mrf.mxu0
    %1377 = vdwg.mxu0
    %v1378 = vmax.f32 %v1375, 0.0
    %v1379 = vld [vmem:[%s13] sm:$0xff]
    %v1380 = vld [vmem:[%s13 + $0x8] sm:$0xff]
    %v1381 = vld [vmem:[%s13 + $0x10] sm:$0xff]
    %v1382 = vld [vmem:[%s13 + $0x18] sm:$0xff]
    %v1383 = vld [vmem:[%s14] sm:$0x1]
    %v1385 = vlaneseq
    %v1386 = vshrl.u32 %v1385, 7
    %v1387 = vsub.s32 0, %v1386
    %v1388 = vrot.slane %v1383, %v1387
    %v1391 = vsel %vm294, %v1378, 0
    %1393 = vmatprep.subr.mxu0 0.0
    %1394 = vmatpush1.msra.mxu0 0.0
    %1395 = vmatprep.subr.mxu0 0.0
    %1396 = vmatpush1.msra.mxu0 0.0
    %1397 = vmatprep.subr.mxu0 0.0
    %1398 = vmatpush1.msra.mxu0 0.0
    %1399 = vmatprep.subr.mxu0 0.0
    %1400 = vmatpush1.msra.mxu0 0.0
    %1401 = vmatprep.subr.mxu0 0.0
    %1402 = vmatpush1.msra.mxu0 0.0
    %1403 = vmatprep.subr.mxu0 0.0
    %1404 = vmatpush1.msra.mxu0 0.0
    %1405 = vmatprep.subr.mxu0 0.0
    %1406 = vmatpush1.msra.mxu0 0.0
    %1407 = vmatprep.subr.mxu0 0.0
    %1408 = vmatpush1.msra.mxu0 0.0
    %1409 = vmatprep.subr.mxu0 0.0
    %1410 = vmatpush1.msra.mxu0 0.0
    %1411 = vmatprep.subr.mxu0 0.0
    %1412 = vmatpush1.msra.mxu0 0.0
    %1413 = vmatprep.subr.mxu0 0.0
    %1414 = vmatpush1.msra.mxu0 0.0
    %1415 = vmatprep.subr.mxu0 0.0
    %1416 = vmatpush1.msra.mxu0 0.0
    %1417 = vmatprep.subr.mxu0 0.0
    %1418 = vmatpush1.msra.mxu0 %v1382
    %1419 = vmatprep.subr.mxu0 0.0
    %1420 = vmatpush1.msra.mxu0 %v1381
    %1421 = vmatprep.subr.mxu0 0.0
    %1422 = vmatpush1.msra.mxu0 %v1380
    %1423 = vmatprep.subr.mxu0 0.0
    %1424 = vmatpush1.msra.mxu0 %v1379
    %1425 = vmatprep.subr.mxu0 0.0
    %1426 = vmatpush2.msra.mxu0 0.0
    %1427 = vmatprep.subr.mxu0 0.0
    %1428 = vmatpush2.msra.mxu0 0.0
    %1429 = vmatprep.subr.mxu0 0.0
    %1430 = vmatpush2.msra.mxu0 0.0
    %1431 = vmatprep.subr.mxu0 0.0
    %1432 = vmatpush2.msra.mxu0 0.0
    %1433 = vmatprep.subr.mxu0 0.0
    %1434 = vmatpush2.msra.mxu0 0.0
    %1435 = vmatprep.subr.mxu0 0.0
    %1436 = vmatpush2.msra.mxu0 0.0
    %1437 = vmatprep.subr.mxu0 0.0
    %1438 = vmatpush2.msra.mxu0 0.0
    %1439 = vmatprep.subr.mxu0 0.0
    %1440 = vmatpush2.msra.mxu0 0.0
    %1441 = vmatprep.subr.mxu0 0.0
    %1442 = vmatpush2.msra.mxu0 0.0
    %1443 = vmatprep.subr.mxu0 0.0
    %1444 = vmatpush2.msra.mxu0 0.0
    %1445 = vmatprep.subr.mxu0 0.0
    %1446 = vmatpush2.msra.mxu0 0.0
    %1447 = vmatprep.subr.mxu0 0.0
    %1448 = vmatpush2.msra.mxu0 0.0
    %1449 = vmatprep.subr.mxu0 0.0
    %1450 = vmatpush2.msra.mxu0 0.0
    %1451 = vmatprep.subr.mxu0 0.0
    %1452 = vmatpush2.msra.mxu0 0.0
    %1453 = vmatprep.subr.mxu0 0.0
    %1454 = vmatpush2.msra.mxu0 0.0
    %1455 = vmatprep.subr.mxu0 0.0
    %1456 = vmatpush2.msra.mxu0 0.0
    %1457 = vmatprep.mubr.f32.mxu0 0.0
    %1458 = vmatmul.mubr.f32.gmra.mxu0 %v1391
    %v1459 = vpop.f32.mrf.mxu0
    %v1460 = vadd.f32 %v1388, %v1459
    %v1461 = vpop.f32.mrf.mxu0
    %1462 = vdwg.mxu0
    %v1463 = vadd.f32 %v1293, %v1460
    %v1464 = vsel %vm294, %v1463, 0.0
    %1465 = vadd.xlane.f32.xlu0 %v1464
    %v1466 = vpop.xlane.xlu0 %1465
    %v1467 = vmul.f32 %v1466, %v1267
    %v1468 = vsub.f32 %v1463, %v1467
    %v1469 = vmul.f32 %v1468, %v1468
    %v1470 = vsel %vm294, %v1469, 0.0
    %1471 = vadd.xlane.f32.xlu0 %v1470
    %v1472 = vpop.xlane.xlu0 %1471
    %v1473 = vmul.f32 %v1472, %v1267
    %v1474 = vadd.f32 %v1473, 1e-05
    %v1475 = vrsqrt.pop %v1474
    %v1476 = vmul.f32 %v1468, %v1475
    %v1477 = vld [vmem:[%s15] sm:$0x1]
    %v1479 = vlaneseq
    %v1480 = vshrl.u32 %v1479, 7
    %v1481 = vsub.s32 0, %v1480
    %v1482 = vrot.slane %v1477, %v1481
    %v1484 = vmul.f32 %v1476, %v1482
    %v1485 = vld [vmem:[%s16] sm:$0x1]
    %v1487 = vlaneseq
    %v1488 = vshrl.u32 %v1487, 7
    %v1489 = vsub.s32 0, %v1488
    %v1490 = vrot.slane %v1485, %v1489
    %v1492 = vadd.f32 %v1484, %v1490
    %v1493 = vsel %vm294, %v1492, 0.0
    %1494 = vst [vmem:[#allocation2] sm:$0xff] %v1493
    // Predicated region
    $region70: #{tpu_custom_call.1} parent=1 // pred_check
      _
    $region71: #{tpu_custom_call.1} parent=1 // pred_check_branch
      %1496 = sbr.rel (0) target = $region73
    $region72: #{tpu_custom_call.1} parent=1 // pred_region
      %s1498 = ssub.s32 128, 128
      %1499 = vsyncadd [#allocation3], %s1498
      %s1501 = sshll.u32 [#allocation2], 4
      %s1502 = int_to_ptr.vmem [resolvable:$true] %s1501
      %1504 = dma.vmem_to_hbm [thread:$0]  %s1502, 128, %s17, [#allocation3]
    $region73: #{tpu_custom_call.1} parent=1 // pred_fallthru
      _
    // Predicated region
    $region74: #{tpu_custom_call.1} parent=1 // pred_check
      _
    $region75: #{tpu_custom_call.1} parent=1 // pred_check_branch
      %1506 = sbr.rel (0) target = $region77
    $region76: #{tpu_custom_call.1} parent=1 // pred_region
      %1507 = dma.done [#allocation3], 128
    $region77: #{tpu_custom_call.1} parent=1 // pred_fallthru
      _
    %1508 = vsyncpa [#allocation3], 1

</llo_original>
